<compile_context>
chip_gen: v5e
topology: v5e:2x2
jax: 0.10.0
libtpu: 0.0.40
codegen_flags: <defaults>
</compile_context>

<pallas_src>
from functools import partial

import numpy as np
import jax
import jax.numpy as jnp
from jax.experimental import pallas as pl
from jax.experimental.pallas import tpu as pltpu


# ----------------------------------------------------------------------------
# Fused kernel: mlp_tr -> pose, mlp_feat -> feature
# ----------------------------------------------------------------------------
def _gen3d_kernel(x_ref,
                  tw1, tb1, tw2, tb2, tw3, tb3, tw4, tb4,
                  fw1, fb1, fw2, fb2, fw3, fb3, fw4, fb4,
                  pr_ref,
                  r_ref, t_ref, s_ref, feat_ref,
                  *, z_half, n_prim):
    f32 = jnp.float32
    bf16 = jnp.bfloat16

    def lrelu(v):
        return jnp.maximum(v, 0.2 * v)

    def mlp4(h_bf16, w1, b1, w2, b2, w3, b3, w4, b4):
        # Linear -> LeakyReLU(0.2) x3 -> Linear ; bf16 matmuls, f32 accumulation.
        h = lrelu(jnp.dot(h_bf16, w1[...], preferred_element_type=f32) + b1[...])
        h = lrelu(jnp.dot(h.astype(bf16), w2[...], preferred_element_type=f32) + b2[...])
        h = lrelu(jnp.dot(h.astype(bf16), w3[...], preferred_element_type=f32) + b3[...])
        return jnp.dot(h.astype(bf16), w4[...], preferred_element_type=f32) + b4[...]

    x = x_ref[...]

    # ---------------- transform branch -> pose ----------------
    # h4 columns (after host-side W4 column permutation):
    #   [0 , 6*np)  : 6 rotation params, param-major (slab j = param j of all prims)
    #   [6*np, 9*np): translation, instance-major (col = p*3 + k)
    #   [9*np,12*np): scale raw,   instance-major (col = p*3 + k)
    h4 = mlp4(x[:, :z_half].astype(bf16), tw1, tb1, tw2, tb2, tw3, tb3, tw4, tb4)

    npr = n_prim
    a1x, a2x, a1y, a2y, a1z, a2z = (h4[:, j * npr:(j + 1) * npr] for j in range(6))

    # 6D-rotation Gram-Schmidt; eps matches F.normalize's clamp(norm, min=1e-12).
    eps2 = 1e-24
    inv1 = jax.lax.rsqrt(jnp.maximum(a1x * a1x + a1y * a1y + a1z * a1z, eps2))
    b1x, b1y, b1z = a1x * inv1, a1y * inv1, a1z * inv1
    d = b1x * a2x + b1y * a2y + b1z * a2z
    u2x, u2y, u2z = a2x - d * b1x, a2y - d * b1y, a2z - d * b1z
    inv2 = jax.lax.rsqrt(jnp.maximum(u2x * u2x + u2y * u2y + u2z * u2z, eps2))
    b2x, b2y, b2z = u2x * inv2, u2y * inv2, u2z * inv2
    b3x = b1y * b2z - b1z * b2y
    b3y = b1z * b2x - b1x * b2z
    b3z = b1x * b2y - b1y * b2x

    # Row-major 3x3 with columns (b1, b2, b3), assembled param-major on the lanes...
    rcat = jnp.concatenate(
        [b1x, b2x, b3x, b1y, b2y, b3y, b1z, b2z, b3z], axis=-1)   # (tb, 9*np)
    # ...then swizzled to instance-major (col = p*9 + c) by a tiny constant
    # permutation matmul, so the wrapper reshape to (bs*n_prim, 3, 3) is free.
    r_ref[...] = jnp.dot(rcat, pr_ref[...], preferred_element_type=f32)

    t_ref[...] = jnp.tanh(h4[:, 6 * npr:9 * npr])
    s_ref[...] = jax.nn.sigmoid(h4[:, 9 * npr:12 * npr]) * (0.6 - 0.1) + 0.1

    # ---------------- feature branch ----------------
    feat_ref[...] = mlp4(x[:, z_half:].astype(bf16),
                         fw1, fb1, fw2, fb2, fw3, fb3, fw4, fb4)


# ----------------------------------------------------------------------------
# Wrapper
# ----------------------------------------------------------------------------
def _resident(shape):
    nd = len(shape)
    return pl.BlockSpec(shape, lambda i, _nd=nd: (0,) * _nd)


def generator3d_forward(x, kparams, *, n_prim, n_feat, batch_tile=256):
    bs, z_dim = x.shape
    z_half = z_dim // 2
    tb = bs if bs <= batch_tile else batch_tile
    assert bs % tb == 0, "bs must be a multiple of the batch tile"
    grid = (bs // tb,)

    tr, ft = kparams['mlp_tr'], kparams['mlp_feat']
    weight_args = (tr['w1'], tr['b1'], tr['w2'], tr['b2'],
                   tr['w3'], tr['b3'], tr['w4'], tr['b4'],
                   ft['w1'], ft['b1'], ft['w2'], ft['b2'],
                   ft['w3'], ft['b3'], ft['w4'], ft['b4'],
                   kparams['perm_r'])

    in_specs = ([pl.BlockSpec((tb, z_dim), lambda i: (i, 0))] +
                [_resident(a.shape) for a in weight_args])
    out_specs = (pl.BlockSpec((tb, 9 * n_prim), lambda i: (i, 0)),
                 pl.BlockSpec((tb, 3 * n_prim), lambda i: (i, 0)),
                 pl.BlockSpec((tb, 3 * n_prim), lambda i: (i, 0)),
                 pl.BlockSpec((tb, n_feat * n_prim), lambda i: (i, 0)))
    out_shape = (jax.ShapeDtypeStruct((bs, 9 * n_prim), jnp.float32),
                 jax.ShapeDtypeStruct((bs, 3 * n_prim), jnp.float32),
                 jax.ShapeDtypeStruct((bs, 3 * n_prim), jnp.float32),
                 jax.ShapeDtypeStruct((bs, n_feat * n_prim), jnp.float32))

    kernel = partial(_gen3d_kernel, z_half=z_half, n_prim=n_prim)
    r, t, s, f = pl.pallas_call(
        kernel,
        grid=grid,
        in_specs=in_specs,
        out_specs=out_specs,
        out_shape=out_shape,
        compiler_params=pltpu.CompilerParams(dimension_semantics=("parallel",)),
    )(x, *weight_args)

    n = bs * n_prim
    # All reshapes below are contiguous (no XLA transpose / gather).
    return {'R': r.reshape(n, 3, 3),
            't': t.reshape(n, 3),
            'scale': s.reshape(n, 3),
            'feature': f.reshape(n, n_feat)}


# ----------------------------------------------------------------------------
# Parameter construction (module-layout f32) and kernel-layout preparation
# ----------------------------------------------------------------------------
def init_mlp(key, d_in, d_out):
    hidden = [128, 256, 512]
    dims = [d_in] + hidden + [d_out]
    params = {}
    for i in range(4):
        key, kw, kb = jax.random.split(key, 3)
        params[f'w{i + 1}'] = (jax.random.normal(kw, (dims[i], dims[i + 1]), jnp.float32)
                               / jnp.sqrt(float(dims[i])))
        params[f'b{i + 1}'] = jax.random.normal(kb, (1, dims[i + 1]), jnp.float32) * 0.01
    return params


def prepare_params(params_f32, *, n_prim):
    """bf16-cast weights; permute mlp_tr's final layer into the kernel layout;
    build the rotation-component permutation matrix (one-time, outside jit)."""
    npr = n_prim
    # perm[new_col] = old_col   (old col = prim*12 + param_j)
    perm = np.empty(12 * npr, dtype=np.int64)
    for prim in range(npr):
        for j in range(12):
            old = prim * 12 + j
            if j < 6:                       # rotation params -> param-major
                new = j * npr + prim
            elif j < 9:                     # translation -> instance-major
                new = 6 * npr + prim * 3 + (j - 6)
            else:                           # scale -> instance-major
                new = 9 * npr + prim * 3 + (j - 9)
            perm[new] = old

    def cast_mlp(src, col_perm=None):
        out = {}
        for i in range(1, 5):
            w, b = src[f'w{i}'], src[f'b{i}']
            if i == 4 and col_perm is not None:
                w, b = w[:, col_perm], b[:, col_perm]
            out[f'w{i}'] = w.astype(jnp.bfloat16)
            out[f'b{i}'] = b.astype(jnp.float32)
        return out

    # Permutation matmul constant: param-major R components -> instance-major.
    pr = np.zeros((9 * npr, 9 * npr), dtype=np.float32)
    for c in range(9):
        for prim in range(npr):
            pr[c * npr + prim, prim * 9 + c] = 1.0

    return {'mlp_tr': cast_mlp(params_f32['mlp_tr'], perm),
            'mlp_feat': cast_mlp(params_f32['mlp_feat']),
            'perm_r': jnp.asarray(pr)}


# ----------------------------------------------------------------------------
# Pure-JAX reference (same bf16 matmul precision) for validation
# ----------------------------------------------------------------------------
def reference_forward(x, params_f32, *, n_prim):
    bf16 = jnp.bfloat16

    def mlp(h, p):
        for i in range(1, 5):
            h = (jnp.dot(h.astype(bf16), p[f'w{i}'].astype(bf16),
                         preferred_element_type=jnp.float32) + p[f'b{i}'])
            if i < 4:
                h = jnp.maximum(h, 0.2 * h)
        return h

    bs, z = x.shape
    zh = z // 2
    h_tr = mlp(x[:, :zh], params_f32['mlp_tr'])
    h_ft = mlp(x[:, zh:], params_f32['mlp_feat'])

    n = bs * n_prim
    v = h_tr.reshape(n, 12)
    a = v[:, :6].reshape(n, 3, 2)
    a1, a2 = a[..., 0], a[..., 1]

    def normalize(u):
        nrm = jnp.sqrt(jnp.sum(u * u, axis=-1, keepdims=True))
        return u / jnp.maximum(nrm, 1e-12)

    b1 = normalize(a1)
    b2 = normalize(a2 - jnp.sum(b1 * a2, axis=-1, keepdims=True) * b1)
    b3 = jnp.cross(b1, b2)
    R = jnp.stack([b1, b2, b3], axis=-1)
    t = jnp.tanh(v[:, 6:9])
    s = jax.nn.sigmoid(v[:, 9:12]) * (0.6 - 0.1) + 0.1
    return {'R': R, 't': t, 'scale': s, 'feature': h_ft.reshape(n, -1)}


if __name__ == "__main__":
    z_dim = 128          # noise vector dim
    n_prim = 4           # number of foreground primitives
    n_feat = 3           # len(primitive)
    bs = 2

    key = jax.random.PRNGKey(0)
    k_x, k_tr, k_ft = jax.random.split(key, 3)

    x = jax.random.normal(k_x, (bs, z_dim), jnp.float32)
    params = {'mlp_tr': init_mlp(k_tr, z_dim // 2, 12 * n_prim),     # n_tr = 6+3+3
              'mlp_feat': init_mlp(k_ft, z_dim // 2, n_feat * n_prim)}
    kparams = prepare_params(params, n_prim=n_prim)

    fwd = jax.jit(partial(generator3d_forward, n_prim=n_prim, n_feat=n_feat))
    out = fwd(x, kparams)
    out = jax.tree_util.tree_map(jax.block_until_ready, out)

    N = bs * n_prim
    assert out['R'].shape == (N, 3, 3)
    assert out['t'].shape == (N, 3)
    assert out['scale'].shape == (N, 3)
    assert out['feature'].shape == (N, n_feat)

    # numerical check against the pure-JAX reference (same bf16 precision)
    ref = reference_forward(x, params, n_prim=n_prim)
    for k in ('R', 't', 'scale', 'feature'):
        assert jnp.allclose(out[k], ref[k], atol=2e-3, rtol=2e-3), f"mismatch in {k}"

    # structural sanity: R columns ~ orthonormal, t in [-1,1], scale in [0.1,0.6]
    rtr = jnp.einsum('nij,nik->njk', out['R'], out['R'])
    assert jnp.allclose(rtr, jnp.eye(3)[None], atol=1e-4)
    assert bool(jnp.all(jnp.abs(out['t']) <= 1.0))
    assert bool(jnp.all((out['scale'] >= 0.1) & (out['scale'] <= 0.6)))

    print("KERNEL_OK")
</pallas_src>

<mosaic_0001>
module attributes {stable_mosaic.version = 11 : i64} {
  func.func @_gen3d_kernel(%arg0: i32, %arg1: memref<2x128xf32, #tpu.memory_space<vmem>>, %arg2: memref<64x128xbf16, #tpu.memory_space<vmem>>, %arg3: memref<1x128xf32, #tpu.memory_space<vmem>>, %arg4: memref<128x256xbf16, #tpu.memory_space<vmem>>, %arg5: memref<1x256xf32, #tpu.memory_space<vmem>>, %arg6: memref<256x512xbf16, #tpu.memory_space<vmem>>, %arg7: memref<1x512xf32, #tpu.memory_space<vmem>>, %arg8: memref<512x48xbf16, #tpu.memory_space<vmem>>, %arg9: memref<1x48xf32, #tpu.memory_space<vmem>>, %arg10: memref<64x128xbf16, #tpu.memory_space<vmem>>, %arg11: memref<1x128xf32, #tpu.memory_space<vmem>>, %arg12: memref<128x256xbf16, #tpu.memory_space<vmem>>, %arg13: memref<1x256xf32, #tpu.memory_space<vmem>>, %arg14: memref<256x512xbf16, #tpu.memory_space<vmem>>, %arg15: memref<1x512xf32, #tpu.memory_space<vmem>>, %arg16: memref<512x12xbf16, #tpu.memory_space<vmem>>, %arg17: memref<1x12xf32, #tpu.memory_space<vmem>>, %arg18: memref<36x36xf32, #tpu.memory_space<vmem>>, %arg19: memref<2x36xf32, #tpu.memory_space<vmem>>, %arg20: memref<2x12xf32, #tpu.memory_space<vmem>>, %arg21: memref<2x12xf32, #tpu.memory_space<vmem>>, %arg22: memref<2x12xf32, #tpu.memory_space<vmem>>) attributes {dimension_semantics = [#tpu.dimension_semantics<parallel>], iteration_bounds = array<i64: 1>, scalar_prefetch = 0 : i64, scratch_operands = 0 : i64, tpu.core_type = #tpu.core_type<tc>, window_params = [{transform_indices = @transform_0, window_bounds = array<i64: 2, 128>}, {pipeline_mode = #tpu.pipeline_mode<synchronous>, transform_indices = @transform_1, window_bounds = array<i64: 64, 128>}, {pipeline_mode = #tpu.pipeline_mode<synchronous>, transform_indices = @transform_2, window_bounds = array<i64: 1, 128>}, {pipeline_mode = #tpu.pipeline_mode<synchronous>, transform_indices = @transform_3, window_bounds = array<i64: 128, 256>}, {pipeline_mode = #tpu.pipeline_mode<synchronous>, transform_indices = @transform_4, window_bounds = array<i64: 1, 256>}, {pipeline_mode = #tpu.pipeline_mode<synchronous>, transform_indices = @transform_5, window_bounds = array<i64: 256, 512>}, {pipeline_mode = #tpu.pipeline_mode<synchronous>, transform_indices = @transform_6, window_bounds = array<i64: 1, 512>}, {pipeline_mode = #tpu.pipeline_mode<synchronous>, transform_indices = @transform_7, window_bounds = array<i64: 512, 48>}, {pipeline_mode = #tpu.pipeline_mode<synchronous>, transform_indices = @transform_8, window_bounds = array<i64: 1, 48>}, {pipeline_mode = #tpu.pipeline_mode<synchronous>, transform_indices = @transform_9, window_bounds = array<i64: 64, 128>}, {pipeline_mode = #tpu.pipeline_mode<synchronous>, transform_indices = @transform_10, window_bounds = array<i64: 1, 128>}, {pipeline_mode = #tpu.pipeline_mode<synchronous>, transform_indices = @transform_11, window_bounds = array<i64: 128, 256>}, {pipeline_mode = #tpu.pipeline_mode<synchronous>, transform_indices = @transform_12, window_bounds = array<i64: 1, 256>}, {pipeline_mode = #tpu.pipeline_mode<synchronous>, transform_indices = @transform_13, window_bounds = array<i64: 256, 512>}, {pipeline_mode = #tpu.pipeline_mode<synchronous>, transform_indices = @transform_14, window_bounds = array<i64: 1, 512>}, {pipeline_mode = #tpu.pipeline_mode<synchronous>, transform_indices = @transform_15, window_bounds = array<i64: 512, 12>}, {pipeline_mode = #tpu.pipeline_mode<synchronous>, transform_indices = @transform_16, window_bounds = array<i64: 1, 12>}, {pipeline_mode = #tpu.pipeline_mode<synchronous>, transform_indices = @transform_17, window_bounds = array<i64: 36, 36>}, {transform_indices = @transform_18, window_bounds = array<i64: 2, 36>}, {transform_indices = @transform_19, window_bounds = array<i64: 2, 12>}, {transform_indices = @transform_20, window_bounds = array<i64: 2, 12>}, {transform_indices = @transform_21, window_bounds = array<i64: 2, 12>}]} {
    %c0 = arith.constant 0 : index
    %c0_0 = arith.constant 0 : index
    %0 = vector.load %arg1[%c0, %c0_0] : memref<2x128xf32, #tpu.memory_space<vmem>>, vector<2x128xf32>
    %1 = vector.extract_strided_slice %0 {offsets = [0, 0], sizes = [2, 64], strides = [1, 1]} : vector<2x128xf32> to vector<2x64xf32>
    %2 = arith.truncf %1 : vector<2x64xf32> to vector<2x64xbf16>
    %c0_1 = arith.constant 0 : index
    %c0_2 = arith.constant 0 : index
    %3 = vector.load %arg2[%c0_1, %c0_2] : memref<64x128xbf16, #tpu.memory_space<vmem>>, vector<64x128xbf16>
    %cst = arith.constant dense<0.000000e+00> : vector<2x128xf32>
    %4 = tpu.matmul %2, %3, %cst {dimension_numbers = #tpu.dot_dimension_numbers<[1], [0], [0], [1], [0, 0, 1, 1], [], []>} : vector<2x64xbf16>, vector<64x128xbf16>, vector<2x128xf32> -> vector<2x128xf32>
    %c0_3 = arith.constant 0 : index
    %c0_4 = arith.constant 0 : index
    %5 = vector.load %arg3[%c0_3, %c0_4] : memref<1x128xf32, #tpu.memory_space<vmem>>, vector<1x128xf32>
    %6 = vector.broadcast %5 : vector<1x128xf32> to vector<2x128xf32>
    %7 = arith.addf %4, %6 : vector<2x128xf32>
    %cst_5 = arith.constant 2.000000e-01 : f32
    %8 = vector.broadcast %cst_5 : f32 to vector<2x128xf32>
    %9 = arith.mulf %8, %7 : vector<2x128xf32>
    %10 = arith.maximumf %7, %9 : vector<2x128xf32>
    %11 = arith.truncf %10 : vector<2x128xf32> to vector<2x128xbf16>
    %c0_6 = arith.constant 0 : index
    %c0_7 = arith.constant 0 : index
    %12 = vector.load %arg4[%c0_6, %c0_7] : memref<128x256xbf16, #tpu.memory_space<vmem>>, vector<128x256xbf16>
    %cst_8 = arith.constant dense<0.000000e+00> : vector<2x256xf32>
    %13 = tpu.matmul %11, %12, %cst_8 {dimension_numbers = #tpu.dot_dimension_numbers<[1], [0], [0], [1], [0, 0, 1, 1], [], []>} : vector<2x128xbf16>, vector<128x256xbf16>, vector<2x256xf32> -> vector<2x256xf32>
    %c0_9 = arith.constant 0 : index
    %c0_10 = arith.constant 0 : index
    %14 = vector.load %arg5[%c0_9, %c0_10] : memref<1x256xf32, #tpu.memory_space<vmem>>, vector<1x256xf32>
    %15 = vector.broadcast %14 : vector<1x256xf32> to vector<2x256xf32>
    %16 = arith.addf %13, %15 : vector<2x256xf32>
    %cst_11 = arith.constant 2.000000e-01 : f32
    %17 = vector.broadcast %cst_11 : f32 to vector<2x256xf32>
    %18 = arith.mulf %17, %16 : vector<2x256xf32>
    %19 = arith.maximumf %16, %18 : vector<2x256xf32>
    %20 = arith.truncf %19 : vector<2x256xf32> to vector<2x256xbf16>
    %c0_12 = arith.constant 0 : index
    %c0_13 = arith.constant 0 : index
    %21 = vector.load %arg6[%c0_12, %c0_13] : memref<256x512xbf16, #tpu.memory_space<vmem>>, vector<256x512xbf16>
    %cst_14 = arith.constant dense<0.000000e+00> : vector<2x512xf32>
    %22 = tpu.matmul %20, %21, %cst_14 {dimension_numbers = #tpu.dot_dimension_numbers<[1], [0], [0], [1], [0, 0, 1, 1], [], []>} : vector<2x256xbf16>, vector<256x512xbf16>, vector<2x512xf32> -> vector<2x512xf32>
    %c0_15 = arith.constant 0 : index
    %c0_16 = arith.constant 0 : index
    %23 = vector.load %arg7[%c0_15, %c0_16] : memref<1x512xf32, #tpu.memory_space<vmem>>, vector<1x512xf32>
    %24 = vector.broadcast %23 : vector<1x512xf32> to vector<2x512xf32>
    %25 = arith.addf %22, %24 : vector<2x512xf32>
    %cst_17 = arith.constant 2.000000e-01 : f32
    %26 = vector.broadcast %cst_17 : f32 to vector<2x512xf32>
    %27 = arith.mulf %26, %25 : vector<2x512xf32>
    %28 = arith.maximumf %25, %27 : vector<2x512xf32>
    %29 = arith.truncf %28 : vector<2x512xf32> to vector<2x512xbf16>
    %c0_18 = arith.constant 0 : index
    %c0_19 = arith.constant 0 : index
    %30 = vector.load %arg8[%c0_18, %c0_19] : memref<512x48xbf16, #tpu.memory_space<vmem>>, vector<512x48xbf16>
    %cst_20 = arith.constant dense<0.000000e+00> : vector<2x48xf32>
    %31 = tpu.matmul %29, %30, %cst_20 {dimension_numbers = #tpu.dot_dimension_numbers<[1], [0], [0], [1], [0, 0, 1, 1], [], []>} : vector<2x512xbf16>, vector<512x48xbf16>, vector<2x48xf32> -> vector<2x48xf32>
    %c0_21 = arith.constant 0 : index
    %c0_22 = arith.constant 0 : index
    %32 = vector.load %arg9[%c0_21, %c0_22] : memref<1x48xf32, #tpu.memory_space<vmem>>, vector<1x48xf32>
    %33 = vector.broadcast %32 : vector<1x48xf32> to vector<2x48xf32>
    %34 = arith.addf %31, %33 : vector<2x48xf32>
    %35 = vector.extract_strided_slice %34 {offsets = [0, 0], sizes = [2, 4], strides = [1, 1]} : vector<2x48xf32> to vector<2x4xf32>
    %36 = vector.extract_strided_slice %34 {offsets = [0, 4], sizes = [2, 4], strides = [1, 1]} : vector<2x48xf32> to vector<2x4xf32>
    %37 = vector.extract_strided_slice %34 {offsets = [0, 8], sizes = [2, 4], strides = [1, 1]} : vector<2x48xf32> to vector<2x4xf32>
    %38 = vector.extract_strided_slice %34 {offsets = [0, 12], sizes = [2, 4], strides = [1, 1]} : vector<2x48xf32> to vector<2x4xf32>
    %39 = vector.extract_strided_slice %34 {offsets = [0, 16], sizes = [2, 4], strides = [1, 1]} : vector<2x48xf32> to vector<2x4xf32>
    %40 = vector.extract_strided_slice %34 {offsets = [0, 20], sizes = [2, 4], strides = [1, 1]} : vector<2x48xf32> to vector<2x4xf32>
    %41 = arith.mulf %35, %35 : vector<2x4xf32>
    %42 = arith.mulf %37, %37 : vector<2x4xf32>
    %43 = arith.addf %41, %42 : vector<2x4xf32>
    %44 = arith.mulf %39, %39 : vector<2x4xf32>
    %45 = arith.addf %43, %44 : vector<2x4xf32>
    %cst_23 = arith.constant 1.000000e-24 : f32
    %46 = vector.broadcast %cst_23 : f32 to vector<2x4xf32>
    %47 = arith.maximumf %45, %46 : vector<2x4xf32>
    %48 = math.rsqrt %47 : vector<2x4xf32>
    %49 = arith.mulf %35, %48 : vector<2x4xf32>
    %50 = arith.mulf %37, %48 : vector<2x4xf32>
    %51 = arith.mulf %39, %48 : vector<2x4xf32>
    %52 = arith.mulf %49, %36 : vector<2x4xf32>
    %53 = arith.mulf %50, %38 : vector<2x4xf32>
    %54 = arith.addf %52, %53 : vector<2x4xf32>
    %55 = arith.mulf %51, %40 : vector<2x4xf32>
    %56 = arith.addf %54, %55 : vector<2x4xf32>
    %57 = arith.mulf %56, %49 : vector<2x4xf32>
    %58 = arith.subf %36, %57 : vector<2x4xf32>
    %59 = arith.mulf %56, %50 : vector<2x4xf32>
    %60 = arith.subf %38, %59 : vector<2x4xf32>
    %61 = arith.mulf %56, %51 : vector<2x4xf32>
    %62 = arith.subf %40, %61 : vector<2x4xf32>
    %63 = arith.mulf %58, %58 : vector<2x4xf32>
    %64 = arith.mulf %60, %60 : vector<2x4xf32>
    %65 = arith.addf %63, %64 : vector<2x4xf32>
    %66 = arith.mulf %62, %62 : vector<2x4xf32>
    %67 = arith.addf %65, %66 : vector<2x4xf32>
    %cst_24 = arith.constant 1.000000e-24 : f32
    %68 = vector.broadcast %cst_24 : f32 to vector<2x4xf32>
    %69 = arith.maximumf %67, %68 : vector<2x4xf32>
    %70 = math.rsqrt %69 : vector<2x4xf32>
    %71 = arith.mulf %58, %70 : vector<2x4xf32>
    %72 = arith.mulf %60, %70 : vector<2x4xf32>
    %73 = arith.mulf %62, %70 : vector<2x4xf32>
    %74 = arith.mulf %50, %73 : vector<2x4xf32>
    %75 = arith.mulf %51, %72 : vector<2x4xf32>
    %76 = arith.subf %74, %75 : vector<2x4xf32>
    %77 = arith.mulf %51, %71 : vector<2x4xf32>
    %78 = arith.mulf %49, %73 : vector<2x4xf32>
    %79 = arith.subf %77, %78 : vector<2x4xf32>
    %80 = arith.mulf %49, %72 : vector<2x4xf32>
    %81 = arith.mulf %50, %71 : vector<2x4xf32>
    %82 = arith.subf %80, %81 : vector<2x4xf32>
    %83 = tpu.concatenate %49, %71, %76, %50, %72, %79, %51, %73, %82 in 1 : vector<2x4xf32>, vector<2x4xf32>, vector<2x4xf32>, vector<2x4xf32>, vector<2x4xf32>, vector<2x4xf32>, vector<2x4xf32>, vector<2x4xf32>, vector<2x4xf32> -> vector<2x36xf32>
    %c0_25 = arith.constant 0 : index
    %c0_26 = arith.constant 0 : index
    %84 = vector.load %arg18[%c0_25, %c0_26] : memref<36x36xf32, #tpu.memory_space<vmem>>, vector<36x36xf32>
    %cst_27 = arith.constant dense<0.000000e+00> : vector<2x36xf32>
    %85 = tpu.matmul %83, %84, %cst_27 {dimension_numbers = #tpu.dot_dimension_numbers<[1], [0], [0], [1], [0, 0, 1, 1], [], []>} : vector<2x36xf32>, vector<36x36xf32>, vector<2x36xf32> -> vector<2x36xf32>
    %c0_28 = arith.constant 0 : index
    %c0_29 = arith.constant 0 : index
    %86 = vector.load %arg19[%c0_28, %c0_29] : memref<2x36xf32, #tpu.memory_space<vmem>>, vector<2x36xf32>
    tpu.vector_store %arg19[%c0_28, %c0_29], %85 {strides = array<i32>} : memref<2x36xf32, #tpu.memory_space<vmem>>, vector<2x36xf32>,
    %87 = vector.extract_strided_slice %34 {offsets = [0, 24], sizes = [2, 12], strides = [1, 1]} : vector<2x48xf32> to vector<2x12xf32>
    %88 = math.tanh %87 : vector<2x12xf32>
    %c0_30 = arith.constant 0 : index
    %c0_31 = arith.constant 0 : index
    %89 = vector.load %arg20[%c0_30, %c0_31] : memref<2x12xf32, #tpu.memory_space<vmem>>, vector<2x12xf32>
    tpu.vector_store %arg20[%c0_30, %c0_31], %88 {strides = array<i32>} : memref<2x12xf32, #tpu.memory_space<vmem>>, vector<2x12xf32>,
    %90 = vector.extract_strided_slice %34 {offsets = [0, 36], sizes = [2, 12], strides = [1, 1]} : vector<2x48xf32> to vector<2x12xf32>
    %91 = arith.negf %90 : vector<2x12xf32>
    %92 = math.exp %91 : vector<2x12xf32>
    %cst_32 = arith.constant 1.000000e+00 : f32
    %93 = vector.broadcast %cst_32 : f32 to vector<2x12xf32>
    %94 = arith.addf %93, %92 : vector<2x12xf32>
    %95 = arith.divf %93, %94 : vector<2x12xf32>
    %cst_33 = arith.constant 5.000000e-01 : f32
    %96 = vector.broadcast %cst_33 : f32 to vector<2x12xf32>
    %97 = arith.mulf %95, %96 : vector<2x12xf32>
    %cst_34 = arith.constant 1.000000e-01 : f32
    %98 = vector.broadcast %cst_34 : f32 to vector<2x12xf32>
    %99 = arith.addf %97, %98 : vector<2x12xf32>
    %c0_35 = arith.constant 0 : index
    %c0_36 = arith.constant 0 : index
    %100 = vector.load %arg21[%c0_35, %c0_36] : memref<2x12xf32, #tpu.memory_space<vmem>>, vector<2x12xf32>
    tpu.vector_store %arg21[%c0_35, %c0_36], %99 {strides = array<i32>} : memref<2x12xf32, #tpu.memory_space<vmem>>, vector<2x12xf32>,
    %101 = vector.extract_strided_slice %0 {offsets = [0, 64], sizes = [2, 64], strides = [1, 1]} : vector<2x128xf32> to vector<2x64xf32>
    %102 = arith.truncf %101 : vector<2x64xf32> to vector<2x64xbf16>
    %c0_37 = arith.constant 0 : index
    %c0_38 = arith.constant 0 : index
    %103 = vector.load %arg10[%c0_37, %c0_38] : memref<64x128xbf16, #tpu.memory_space<vmem>>, vector<64x128xbf16>
    %cst_39 = arith.constant dense<0.000000e+00> : vector<2x128xf32>
    %104 = tpu.matmul %102, %103, %cst_39 {dimension_numbers = #tpu.dot_dimension_numbers<[1], [0], [0], [1], [0, 0, 1, 1], [], []>} : vector<2x64xbf16>, vector<64x128xbf16>, vector<2x128xf32> -> vector<2x128xf32>
    %c0_40 = arith.constant 0 : index
    %c0_41 = arith.constant 0 : index
    %105 = vector.load %arg11[%c0_40, %c0_41] : memref<1x128xf32, #tpu.memory_space<vmem>>, vector<1x128xf32>
    %106 = vector.broadcast %105 : vector<1x128xf32> to vector<2x128xf32>
    %107 = arith.addf %104, %106 : vector<2x128xf32>
    %cst_42 = arith.constant 2.000000e-01 : f32
    %108 = vector.broadcast %cst_42 : f32 to vector<2x128xf32>
    %109 = arith.mulf %108, %107 : vector<2x128xf32>
    %110 = arith.maximumf %107, %109 : vector<2x128xf32>
    %111 = arith.truncf %110 : vector<2x128xf32> to vector<2x128xbf16>
    %c0_43 = arith.constant 0 : index
    %c0_44 = arith.constant 0 : index
    %112 = vector.load %arg12[%c0_43, %c0_44] : memref<128x256xbf16, #tpu.memory_space<vmem>>, vector<128x256xbf16>
    %cst_45 = arith.constant dense<0.000000e+00> : vector<2x256xf32>
    %113 = tpu.matmul %111, %112, %cst_45 {dimension_numbers = #tpu.dot_dimension_numbers<[1], [0], [0], [1], [0, 0, 1, 1], [], []>} : vector<2x128xbf16>, vector<128x256xbf16>, vector<2x256xf32> -> vector<2x256xf32>
    %c0_46 = arith.constant 0 : index
    %c0_47 = arith.constant 0 : index
    %114 = vector.load %arg13[%c0_46, %c0_47] : memref<1x256xf32, #tpu.memory_space<vmem>>, vector<1x256xf32>
    %115 = vector.broadcast %114 : vector<1x256xf32> to vector<2x256xf32>
    %116 = arith.addf %113, %115 : vector<2x256xf32>
    %cst_48 = arith.constant 2.000000e-01 : f32
    %117 = vector.broadcast %cst_48 : f32 to vector<2x256xf32>
    %118 = arith.mulf %117, %116 : vector<2x256xf32>
    %119 = arith.maximumf %116, %118 : vector<2x256xf32>
    %120 = arith.truncf %119 : vector<2x256xf32> to vector<2x256xbf16>
    %c0_49 = arith.constant 0 : index
    %c0_50 = arith.constant 0 : index
    %121 = vector.load %arg14[%c0_49, %c0_50] : memref<256x512xbf16, #tpu.memory_space<vmem>>, vector<256x512xbf16>
    %cst_51 = arith.constant dense<0.000000e+00> : vector<2x512xf32>
    %122 = tpu.matmul %120, %121, %cst_51 {dimension_numbers = #tpu.dot_dimension_numbers<[1], [0], [0], [1], [0, 0, 1, 1], [], []>} : vector<2x256xbf16>, vector<256x512xbf16>, vector<2x512xf32> -> vector<2x512xf32>
    %c0_52 = arith.constant 0 : index
    %c0_53 = arith.constant 0 : index
    %123 = vector.load %arg15[%c0_52, %c0_53] : memref<1x512xf32, #tpu.memory_space<vmem>>, vector<1x512xf32>
    %124 = vector.broadcast %123 : vector<1x512xf32> to vector<2x512xf32>
    %125 = arith.addf %122, %124 : vector<2x512xf32>
    %cst_54 = arith.constant 2.000000e-01 : f32
    %126 = vector.broadcast %cst_54 : f32 to vector<2x512xf32>
    %127 = arith.mulf %126, %125 : vector<2x512xf32>
    %128 = arith.maximumf %125, %127 : vector<2x512xf32>
    %129 = arith.truncf %128 : vector<2x512xf32> to vector<2x512xbf16>
    %c0_55 = arith.constant 0 : index
    %c0_56 = arith.constant 0 : index
    %130 = vector.load %arg16[%c0_55, %c0_56] : memref<512x12xbf16, #tpu.memory_space<vmem>>, vector<512x12xbf16>
    %cst_57 = arith.constant dense<0.000000e+00> : vector<2x12xf32>
    %131 = tpu.matmul %129, %130, %cst_57 {dimension_numbers = #tpu.dot_dimension_numbers<[1], [0], [0], [1], [0, 0, 1, 1], [], []>} : vector<2x512xbf16>, vector<512x12xbf16>, vector<2x12xf32> -> vector<2x12xf32>
    %c0_58 = arith.constant 0 : index
    %c0_59 = arith.constant 0 : index
    %132 = vector.load %arg17[%c0_58, %c0_59] : memref<1x12xf32, #tpu.memory_space<vmem>>, vector<1x12xf32>
    %133 = vector.broadcast %132 : vector<1x12xf32> to vector<2x12xf32>
    %134 = arith.addf %131, %133 : vector<2x12xf32>
    %c0_60 = arith.constant 0 : index
    %c0_61 = arith.constant 0 : index
    %135 = vector.load %arg22[%c0_60, %c0_61] : memref<2x12xf32, #tpu.memory_space<vmem>>, vector<2x12xf32>
    tpu.vector_store %arg22[%c0_60, %c0_61], %134 {strides = array<i32>} : memref<2x12xf32, #tpu.memory_space<vmem>>, vector<2x12xf32>,
    return
  }
  func.func @transform_0(%arg0: i32) -> (i32, i32) {
    %c0_i32 = arith.constant 0 : i32
    %c0_i32_0 = arith.constant 0 : i32
    return %arg0, %c0_i32 : i32, i32
  }
  func.func @transform_1(%arg0: i32) -> (i32, i32) {
    %c0_i32 = arith.constant 0 : i32
    %c0_i32_0 = arith.constant 0 : i32
    %c0_i32_1 = arith.constant 0 : i32
    return %c0_i32, %c0_i32_0 : i32, i32
  }
  func.func @transform_2(%arg0: i32) -> (i32, i32) {
    %c0_i32 = arith.constant 0 : i32
    %c0_i32_0 = arith.constant 0 : i32
    %c0_i32_1 = arith.constant 0 : i32
    return %c0_i32, %c0_i32_0 : i32, i32
  }
  func.func @transform_3(%arg0: i32) -> (i32, i32) {
    %c0_i32 = arith.constant 0 : i32
    %c0_i32_0 = arith.constant 0 : i32
    %c0_i32_1 = arith.constant 0 : i32
    return %c0_i32, %c0_i32_0 : i32, i32
  }
  func.func @transform_4(%arg0: i32) -> (i32, i32) {
    %c0_i32 = arith.constant 0 : i32
    %c0_i32_0 = arith.constant 0 : i32
    %c0_i32_1 = arith.constant 0 : i32
    return %c0_i32, %c0_i32_0 : i32, i32
  }
  func.func @transform_5(%arg0: i32) -> (i32, i32) {
    %c0_i32 = arith.constant 0 : i32
    %c0_i32_0 = arith.constant 0 : i32
    %c0_i32_1 = arith.constant 0 : i32
    return %c0_i32, %c0_i32_0 : i32, i32
  }
  func.func @transform_6(%arg0: i32) -> (i32, i32) {
    %c0_i32 = arith.constant 0 : i32
    %c0_i32_0 = arith.constant 0 : i32
    %c0_i32_1 = arith.constant 0 : i32
    return %c0_i32, %c0_i32_0 : i32, i32
  }
  func.func @transform_7(%arg0: i32) -> (i32, i32) {
    %c0_i32 = arith.constant 0 : i32
    %c0_i32_0 = arith.constant 0 : i32
    %c0_i32_1 = arith.constant 0 : i32
    return %c0_i32, %c0_i32_0 : i32, i32
  }
  func.func @transform_8(%arg0: i32) -> (i32, i32) {
    %c0_i32 = arith.constant 0 : i32
    %c0_i32_0 = arith.constant 0 : i32
    %c0_i32_1 = arith.constant 0 : i32
    return %c0_i32, %c0_i32_0 : i32, i32
  }
  func.func @transform_9(%arg0: i32) -> (i32, i32) {
    %c0_i32 = arith.constant 0 : i32
    %c0_i32_0 = arith.constant 0 : i32
    %c0_i32_1 = arith.constant 0 : i32
    return %c0_i32, %c0_i32_0 : i32, i32
  }
  func.func @transform_10(%arg0: i32) -> (i32, i32) {
    %c0_i32 = arith.constant 0 : i32
    %c0_i32_0 = arith.constant 0 : i32
    %c0_i32_1 = arith.constant 0 : i32
    return %c0_i32, %c0_i32_0 : i32, i32
  }
  func.func @transform_11(%arg0: i32) -> (i32, i32) {
    %c0_i32 = arith.constant 0 : i32
    %c0_i32_0 = arith.constant 0 : i32
    %c0_i32_1 = arith.constant 0 : i32
    return %c0_i32, %c0_i32_0 : i32, i32
  }
  func.func @transform_12(%arg0: i32) -> (i32, i32) {
    %c0_i32 = arith.constant 0 : i32
    %c0_i32_0 = arith.constant 0 : i32
    %c0_i32_1 = arith.constant 0 : i32
    return %c0_i32, %c0_i32_0 : i32, i32
  }
  func.func @transform_13(%arg0: i32) -> (i32, i32) {
    %c0_i32 = arith.constant 0 : i32
    %c0_i32_0 = arith.constant 0 : i32
    %c0_i32_1 = arith.constant 0 : i32
    return %c0_i32, %c0_i32_0 : i32, i32
  }
  func.func @transform_14(%arg0: i32) -> (i32, i32) {
    %c0_i32 = arith.constant 0 : i32
    %c0_i32_0 = arith.constant 0 : i32
    %c0_i32_1 = arith.constant 0 : i32
    return %c0_i32, %c0_i32_0 : i32, i32
  }
  func.func @transform_15(%arg0: i32) -> (i32, i32) {
    %c0_i32 = arith.constant 0 : i32
    %c0_i32_0 = arith.constant 0 : i32
    %c0_i32_1 = arith.constant 0 : i32
    return %c0_i32, %c0_i32_0 : i32, i32
  }
  func.func @transform_16(%arg0: i32) -> (i32, i32) {
    %c0_i32 = arith.constant 0 : i32
    %c0_i32_0 = arith.constant 0 : i32
    %c0_i32_1 = arith.constant 0 : i32
    return %c0_i32, %c0_i32_0 : i32, i32
  }
  func.func @transform_17(%arg0: i32) -> (i32, i32) {
    %c0_i32 = arith.constant 0 : i32
    %c0_i32_0 = arith.constant 0 : i32
    %c0_i32_1 = arith.constant 0 : i32
    return %c0_i32, %c0_i32_0 : i32, i32
  }
  func.func @transform_18(%arg0: i32) -> (i32, i32) {
    %c0_i32 = arith.constant 0 : i32
    %c0_i32_0 = arith.constant 0 : i32
    return %arg0, %c0_i32 : i32, i32
  }
  func.func @transform_19(%arg0: i32) -> (i32, i32) {
    %c0_i32 = arith.constant 0 : i32
    %c0_i32_0 = arith.constant 0 : i32
    return %arg0, %c0_i32 : i32, i32
  }
  func.func @transform_20(%arg0: i32) -> (i32, i32) {
    %c0_i32 = arith.constant 0 : i32
    %c0_i32_0 = arith.constant 0 : i32
    return %arg0, %c0_i32 : i32, i32
  }
  func.func @transform_21(%arg0: i32) -> (i32, i32) {
    %c0_i32 = arith.constant 0 : i32
    %c0_i32_0 = arith.constant 0 : i32
    return %arg0, %c0_i32 : i32, i32
  }
}

</mosaic_0001>

<llo_original>
// kernel: generator3d_forward.1
$region0: #{generator3d_forward.1}
  #allocation0 [shape = 'u32[]', space=smem, size = 0x4, offset = 0x4, fixed_abs, tag = 'smem constant byte address 0x4 - core index']
  #allocation1 [shape = 'u32[72,128]{1,0:T(1,128)}', space=vmem, size = 0x9000, scoped, tag = 'internal scratch']
  %s0 = inlined_call_operand.hbm [shape: f32[2,128], index: 0, kind: input, shape index: {}]
  %s1 = inlined_call_operand.hbm [shape: bf16[64,128], index: 1, kind: input, shape index: {}]
  %s2 = inlined_call_operand.vmem [shape: f32[1,128], index: 2, kind: input, shape index: {}]
  %s3 = inlined_call_operand.hbm [shape: bf16[128,256], index: 3, kind: input, shape index: {}]
  %s4 = inlined_call_operand.hbm [shape: f32[1,256], index: 4, kind: input, shape index: {}]
  %s5 = inlined_call_operand.vmem [shape: bf16[256,512], index: 5, kind: input, shape index: {}]
  %s6 = inlined_call_operand.vmem [shape: f32[1,512], index: 6, kind: input, shape index: {}]
  %s7 = inlined_call_operand.vmem [shape: bf16[512,48], index: 7, kind: input, shape index: {}]
  %s8 = inlined_call_operand.hbm [shape: f32[1,48], index: 8, kind: input, shape index: {}]
  %s9 = inlined_call_operand.hbm [shape: bf16[64,128], index: 9, kind: input, shape index: {}]
  %s10 = inlined_call_operand.hbm [shape: f32[1,128], index: 10, kind: input, shape index: {}]
  %s11 = inlined_call_operand.hbm [shape: bf16[128,256], index: 11, kind: input, shape index: {}]
  %s12 = inlined_call_operand.hbm [shape: f32[1,256], index: 12, kind: input, shape index: {}]
  %s13 = inlined_call_operand.hbm [shape: bf16[256,512], index: 13, kind: input, shape index: {}]
  %s14 = inlined_call_operand.hbm [shape: f32[1,512], index: 14, kind: input, shape index: {}]
  %s15 = inlined_call_operand.vmem [shape: bf16[512,12], index: 15, kind: input, shape index: {}]
  %s16 = inlined_call_operand.hbm [shape: f32[1,12], index: 16, kind: input, shape index: {}]
  %s17 = inlined_call_operand.vmem [shape: f32[36,36], index: 17, kind: input, shape index: {}]
  %s18 = inlined_call_operand.vmem [shape: f32[2,36], index: 18, kind: output, shape index: {0}]
  %s19 = inlined_call_operand.vmem [shape: f32[2,12], index: 19, kind: output, shape index: {1}]
  %s20 = inlined_call_operand.vmem [shape: f32[2,12], index: 20, kind: output, shape index: {2}]
  %s21 = inlined_call_operand.vmem [shape: f32[2,12], index: 21, kind: output, shape index: {3}]
  %22 = xla_tuple %s18, %s19, %s20, %s21
  %s23 = sld [smem:[#allocation0]]
  $region154: #{generator3d_forward.1} parent=0
    _
  %s25 = ssub.s32 1, %s23
  %s26 = scalar_select 0, %s25, %s23
  $region1: #{generator3d_forward.1} parent=0
    #allocation2 [shape = 'u8[1024]{0}', space=vmem, size = 0x400, scoped, tag = 'input window, operand 0, single buffered']
    #allocation3 [shape = 's32[1]{0}', space=sflag, size = 0x4, scoped, tag = 'scoped memory for generator3d_forward.1']
    #allocation4 [shape = 'u8[16384]{0}', space=vmem, size = 0x4000, scoped, tag = 'input window, operand 1, single buffered']
    #allocation5 [shape = 's32[1]{0}', space=sflag, size = 0x4, scoped, tag = 'scoped memory for generator3d_forward.1']
    #allocation6 [shape = 'u8[65536]{0}', space=vmem, size = 0x10000, scoped, tag = 'input window, operand 3, single buffered']
    #allocation7 [shape = 'u8[1024]{0}', space=vmem, size = 0x400, scoped, tag = 'input window, operand 4, single buffered']
    #allocation8 [shape = 's32[1]{0}', space=sflag, size = 0x4, scoped, tag = 'scoped memory for generator3d_forward.1']
    #allocation9 [shape = 'u8[512]{0}', space=vmem, size = 0x400, scoped, tag = 'input window, operand 8, single buffered']
    #allocation10 [shape = 'u8[16384]{0}', space=vmem, size = 0x4000, scoped, tag = 'input window, operand 9, single buffered']
    #allocation11 [shape = 's32[1]{0}', space=sflag, size = 0x4, scoped, tag = 'scoped memory for generator3d_forward.1']
    #allocation12 [shape = 'u8[512]{0}', space=vmem, size = 0x400, scoped, tag = 'input window, operand 10, single buffered']
    #allocation13 [shape = 'u8[65536]{0}', space=vmem, size = 0x10000, scoped, tag = 'input window, operand 11, single buffered']
    #allocation14 [shape = 's32[1]{0}', space=sflag, size = 0x4, scoped, tag = 'scoped memory for generator3d_forward.1']
    #allocation15 [shape = 'u8[1024]{0}', space=vmem, size = 0x400, scoped, tag = 'input window, operand 12, single buffered']
    #allocation16 [shape = 'u8[262144]{0}', space=vmem, size = 0x40000, scoped, tag = 'input window, operand 13, single buffered']
    #allocation17 [shape = 's32[1]{0}', space=sflag, size = 0x4, scoped, tag = 'scoped memory for generator3d_forward.1']
    #allocation18 [shape = 'u8[2048]{0}', space=vmem, size = 0x800, scoped, tag = 'input window, operand 14, single buffered']
    #allocation19 [shape = 'u8[512]{0}', space=vmem, size = 0x400, scoped, tag = 'input window, operand 16, single buffered']
    #allocation20 [shape = 's32[1]{0}', space=sflag, size = 0x4, scoped, tag = 'scoped memory for generator3d_forward.1']
    %27 = vsyncpa [#allocation3], 0
    %28 = vsyncpa [#allocation5], 0
    %29 = vsyncpa [#allocation8], 0
    %30 = vsyncpa [#allocation11], 0
    %31 = vsyncpa [#allocation14], 0
    %32 = vsyncpa [#allocation17], 0
    %33 = vsyncpa [#allocation20], 0
    // Predicated region
    $region2: #{generator3d_forward.1} parent=1 // pred_check
      _
    $region3: #{generator3d_forward.1} parent=1 // pred_check_branch
      %35 = sbr.rel (0) target = $region5
    $region4: #{generator3d_forward.1} parent=1 // pred_region
      %37 = vsyncadd [#allocation3], 0
      %s39 = sshll.u32 %s0, 4
      %s40 = int_to_ptr.hbm [resolvable:$true] %s39
      %s41 = sshll.u32 [#allocation2], 4
      %s42 = int_to_ptr.vmem [resolvable:$true] %s41
      %44 = dma.hbm_to_vmem [thread:$0]  %s40, 32, %s42, [#allocation3]
    $region5: #{generator3d_forward.1} parent=1 // pred_fallthru
      _
    // Predicated region
    $region6: #{generator3d_forward.1} parent=1 // pred_check
      _
    $region7: #{generator3d_forward.1} parent=1 // pred_check_branch
      %46 = sbr.rel (0) target = $region9
    $region8: #{generator3d_forward.1} parent=1 // pred_region
      %48 = vsyncadd [#allocation5], 0
      %s49 = sshll.u32 %s1, 4
      %s50 = int_to_ptr.hbm [resolvable:$true] %s49
      %s51 = sshll.u32 [#allocation4], 4
      %s52 = int_to_ptr.vmem [resolvable:$true] %s51
      %57 = dma.hbm_to_vmem [thread:$0]  %s50, 512, %s52, [#allocation5], 64, 64, 4
    $region9: #{generator3d_forward.1} parent=1 // pred_fallthru
      _
    // Predicated region
    $region10: #{generator3d_forward.1} parent=1 // pred_check
      _
    $region11: #{generator3d_forward.1} parent=1 // pred_check_branch
      %59 = sbr.rel (0) target = $region13
    $region12: #{generator3d_forward.1} parent=1 // pred_region
      _
    $region13: #{generator3d_forward.1} parent=1 // pred_fallthru
      _
    // Predicated region
    $region14: #{generator3d_forward.1} parent=1 // pred_check
      _
    $region15: #{generator3d_forward.1} parent=1 // pred_check_branch
      %61 = sbr.rel (0) target = $region17
    $region16: #{generator3d_forward.1} parent=1 // pred_region
      %63 = vsyncadd [#allocation5], 0
      %s64 = sshll.u32 %s3, 4
      %s65 = int_to_ptr.hbm [resolvable:$true] %s64
      %s66 = sshll.u32 [#allocation6], 4
      %s67 = int_to_ptr.vmem [resolvable:$true] %s66
      %72 = dma.hbm_to_vmem [thread:$0]  %s65, 2048, %s67, [#allocation5], 128, 128, 8
    $region17: #{generator3d_forward.1} parent=1 // pred_fallthru
      _
    // Predicated region
    $region18: #{generator3d_forward.1} parent=1 // pred_check
      _
    $region19: #{generator3d_forward.1} parent=1 // pred_check_branch
      %74 = sbr.rel (0) target = $region21
    $region20: #{generator3d_forward.1} parent=1 // pred_region
      %76 = vsyncadd [#allocation8], 0
      %s78 = sshll.u32 %s4, 4
      %s79 = int_to_ptr.hbm [resolvable:$true] %s78
      %s80 = sshll.u32 [#allocation7], 4
      %s81 = int_to_ptr.vmem [resolvable:$true] %s80
      %83 = dma.hbm_to_vmem [thread:$0]  %s79, 32, %s81, [#allocation8]
    $region21: #{generator3d_forward.1} parent=1 // pred_fallthru
      _
    // Predicated region
    $region22: #{generator3d_forward.1} parent=1 // pred_check
      _
    $region23: #{generator3d_forward.1} parent=1 // pred_check_branch
      %85 = sbr.rel (0) target = $region25
    $region24: #{generator3d_forward.1} parent=1 // pred_region
      _
    $region25: #{generator3d_forward.1} parent=1 // pred_fallthru
      _
    // Predicated region
    $region26: #{generator3d_forward.1} parent=1 // pred_check
      _
    $region27: #{generator3d_forward.1} parent=1 // pred_check_branch
      %87 = sbr.rel (0) target = $region29
    $region28: #{generator3d_forward.1} parent=1 // pred_region
      _
    $region29: #{generator3d_forward.1} parent=1 // pred_fallthru
      _
    // Predicated region
    $region30: #{generator3d_forward.1} parent=1 // pred_check
      _
    $region31: #{generator3d_forward.1} parent=1 // pred_check_branch
      %89 = sbr.rel (0) target = $region33
    $region32: #{generator3d_forward.1} parent=1 // pred_region
      _
    $region33: #{generator3d_forward.1} parent=1 // pred_fallthru
      _
    // Predicated region
    $region34: #{generator3d_forward.1} parent=1 // pred_check
      _
    $region35: #{generator3d_forward.1} parent=1 // pred_check_branch
      %91 = sbr.rel (0) target = $region37
    $region36: #{generator3d_forward.1} parent=1 // pred_region
      %93 = vsyncadd [#allocation8], 0
      %s95 = sshll.u32 %s8, 4
      %s96 = int_to_ptr.hbm [resolvable:$true] %s95
      %s97 = sshll.u32 [#allocation9], 4
      %s98 = int_to_ptr.vmem [resolvable:$true] %s97
      %100 = dma.hbm_to_vmem [thread:$0]  %s96, 16, %s98, [#allocation8]
    $region37: #{generator3d_forward.1} parent=1 // pred_fallthru
      _
    // Predicated region
    $region38: #{generator3d_forward.1} parent=1 // pred_check
      _
    $region39: #{generator3d_forward.1} parent=1 // pred_check_branch
      %102 = sbr.rel (0) target = $region41
    $region40: #{generator3d_forward.1} parent=1 // pred_region
      %104 = vsyncadd [#allocation11], 0
      %s105 = sshll.u32 %s9, 4
      %s106 = int_to_ptr.hbm [resolvable:$true] %s105
      %s107 = sshll.u32 [#allocation10], 4
      %s108 = int_to_ptr.vmem [resolvable:$true] %s107
      %113 = dma.hbm_to_vmem [thread:$0]  %s106, 512, %s108, [#allocation11], 64, 64, 4
    $region41: #{generator3d_forward.1} parent=1 // pred_fallthru
      _
    // Predicated region
    $region42: #{generator3d_forward.1} parent=1 // pred_check
      _
    $region43: #{generator3d_forward.1} parent=1 // pred_check_branch
      %115 = sbr.rel (0) target = $region45
    $region44: #{generator3d_forward.1} parent=1 // pred_region
      %117 = vsyncadd [#allocation11], 0
      %s119 = sshll.u32 %s10, 4
      %s120 = int_to_ptr.hbm [resolvable:$true] %s119
      %s121 = sshll.u32 [#allocation12], 4
      %s122 = int_to_ptr.vmem [resolvable:$true] %s121
      %124 = dma.hbm_to_vmem [thread:$0]  %s120, 16, %s122, [#allocation11]
    $region45: #{generator3d_forward.1} parent=1 // pred_fallthru
      _
    // Predicated region
    $region46: #{generator3d_forward.1} parent=1 // pred_check
      _
    $region47: #{generator3d_forward.1} parent=1 // pred_check_branch
      %126 = sbr.rel (0) target = $region49
    $region48: #{generator3d_forward.1} parent=1 // pred_region
      %128 = vsyncadd [#allocation14], 0
      %s129 = sshll.u32 %s11, 4
      %s130 = int_to_ptr.hbm [resolvable:$true] %s129
      %s131 = sshll.u32 [#allocation13], 4
      %s132 = int_to_ptr.vmem [resolvable:$true] %s131
      %137 = dma.hbm_to_vmem [thread:$0]  %s130, 2048, %s132, [#allocation14], 128, 128, 8
    $region49: #{generator3d_forward.1} parent=1 // pred_fallthru
      _
    // Predicated region
    $region50: #{generator3d_forward.1} parent=1 // pred_check
      _
    $region51: #{generator3d_forward.1} parent=1 // pred_check_branch
      %139 = sbr.rel (0) target = $region53
    $region52: #{generator3d_forward.1} parent=1 // pred_region
      %141 = vsyncadd [#allocation14], 0
      %s143 = sshll.u32 %s12, 4
      %s144 = int_to_ptr.hbm [resolvable:$true] %s143
      %s145 = sshll.u32 [#allocation15], 4
      %s146 = int_to_ptr.vmem [resolvable:$true] %s145
      %148 = dma.hbm_to_vmem [thread:$0]  %s144, 32, %s146, [#allocation14]
    $region53: #{generator3d_forward.1} parent=1 // pred_fallthru
      _
    // Predicated region
    $region54: #{generator3d_forward.1} parent=1 // pred_check
      _
    $region55: #{generator3d_forward.1} parent=1 // pred_check_branch
      %150 = sbr.rel (0) target = $region57
    $region56: #{generator3d_forward.1} parent=1 // pred_region
      %152 = vsyncadd [#allocation17], 0
      %s153 = sshll.u32 %s13, 4
      %s154 = int_to_ptr.hbm [resolvable:$true] %s153
      %s155 = sshll.u32 [#allocation16], 4
      %s156 = int_to_ptr.vmem [resolvable:$true] %s155
      %161 = dma.hbm_to_vmem [thread:$0]  %s154, 8192, %s156, [#allocation17], 256, 256, 16
    $region57: #{generator3d_forward.1} parent=1 // pred_fallthru
      _
    // Predicated region
    $region58: #{generator3d_forward.1} parent=1 // pred_check
      _
    $region59: #{generator3d_forward.1} parent=1 // pred_check_branch
      %163 = sbr.rel (0) target = $region61
    $region60: #{generator3d_forward.1} parent=1 // pred_region
      %165 = vsyncadd [#allocation17], 0
      %s167 = sshll.u32 %s14, 4
      %s168 = int_to_ptr.hbm [resolvable:$true] %s167
      %s169 = sshll.u32 [#allocation18], 4
      %s170 = int_to_ptr.vmem [resolvable:$true] %s169
      %172 = dma.hbm_to_vmem [thread:$0]  %s168, 64, %s170, [#allocation17]
    $region61: #{generator3d_forward.1} parent=1 // pred_fallthru
      _
    // Predicated region
    $region62: #{generator3d_forward.1} parent=1 // pred_check
      _
    $region63: #{generator3d_forward.1} parent=1 // pred_check_branch
      %174 = sbr.rel (0) target = $region65
    $region64: #{generator3d_forward.1} parent=1 // pred_region
      _
    $region65: #{generator3d_forward.1} parent=1 // pred_fallthru
      _
    // Predicated region
    $region66: #{generator3d_forward.1} parent=1 // pred_check
      _
    $region67: #{generator3d_forward.1} parent=1 // pred_check_branch
      %176 = sbr.rel (0) target = $region69
    $region68: #{generator3d_forward.1} parent=1 // pred_region
      %178 = vsyncadd [#allocation20], 0
      %s180 = sshll.u32 %s16, 4
      %s181 = int_to_ptr.hbm [resolvable:$true] %s180
      %s182 = sshll.u32 [#allocation19], 4
      %s183 = int_to_ptr.vmem [resolvable:$true] %s182
      %185 = dma.hbm_to_vmem [thread:$0]  %s181, 16, %s183, [#allocation20]
    $region69: #{generator3d_forward.1} parent=1 // pred_fallthru
      _
    // Predicated region
    $region70: #{generator3d_forward.1} parent=1 // pred_check
      _
    $region71: #{generator3d_forward.1} parent=1 // pred_check_branch
      %187 = sbr.rel (0) target = $region73
    $region72: #{generator3d_forward.1} parent=1 // pred_region
      _
    $region73: #{generator3d_forward.1} parent=1 // pred_fallthru
      _
    // Predicated region
    $region74: #{generator3d_forward.1} parent=1 // pred_check
      _
    $region75: #{generator3d_forward.1} parent=1 // pred_check_branch
      %189 = sbr.rel (0) target = $region77
    $region76: #{generator3d_forward.1} parent=1 // pred_region
      %191 = dma.done [#allocation3], 32
    $region77: #{generator3d_forward.1} parent=1 // pred_fallthru
      _
    // Predicated region
    $region78: #{generator3d_forward.1} parent=1 // pred_check
      _
    $region79: #{generator3d_forward.1} parent=1 // pred_check_branch
      %193 = sbr.rel (0) target = $region81
    $region80: #{generator3d_forward.1} parent=1 // pred_region
      %195 = dma.done [#allocation5], 512
    $region81: #{generator3d_forward.1} parent=1 // pred_fallthru
      _
    // Predicated region
    $region82: #{generator3d_forward.1} parent=1 // pred_check
      _
    $region83: #{generator3d_forward.1} parent=1 // pred_check_branch
      %197 = sbr.rel (0) target = $region85
    $region84: #{generator3d_forward.1} parent=1 // pred_region
      %199 = dma.done [#allocation5], 2048
    $region85: #{generator3d_forward.1} parent=1 // pred_fallthru
      _
    // Predicated region
    $region86: #{generator3d_forward.1} parent=1 // pred_check
      _
    $region87: #{generator3d_forward.1} parent=1 // pred_check_branch
      %201 = sbr.rel (0) target = $region89
    $region88: #{generator3d_forward.1} parent=1 // pred_region
      %203 = dma.done [#allocation8], 32
    $region89: #{generator3d_forward.1} parent=1 // pred_fallthru
      _
    // Predicated region
    $region90: #{generator3d_forward.1} parent=1 // pred_check
      _
    $region91: #{generator3d_forward.1} parent=1 // pred_check_branch
      %205 = sbr.rel (0) target = $region93
    $region92: #{generator3d_forward.1} parent=1 // pred_region
      %207 = dma.done [#allocation8], 16
    $region93: #{generator3d_forward.1} parent=1 // pred_fallthru
      _
    // Predicated region
    $region94: #{generator3d_forward.1} parent=1 // pred_check
      _
    $region95: #{generator3d_forward.1} parent=1 // pred_check_branch
      %209 = sbr.rel (0) target = $region97
    $region96: #{generator3d_forward.1} parent=1 // pred_region
      %211 = dma.done [#allocation11], 512
    $region97: #{generator3d_forward.1} parent=1 // pred_fallthru
      _
    // Predicated region
    $region98: #{generator3d_forward.1} parent=1 // pred_check
      _
    $region99: #{generator3d_forward.1} parent=1 // pred_check_branch
      %213 = sbr.rel (0) target = $region101
    $region100: #{generator3d_forward.1} parent=1 // pred_region
      %215 = dma.done [#allocation11], 16
    $region101: #{generator3d_forward.1} parent=1 // pred_fallthru
      _
    // Predicated region
    $region102: #{generator3d_forward.1} parent=1 // pred_check
      _
    $region103: #{generator3d_forward.1} parent=1 // pred_check_branch
      %217 = sbr.rel (0) target = $region105
    $region104: #{generator3d_forward.1} parent=1 // pred_region
      %219 = dma.done [#allocation14], 2048
    $region105: #{generator3d_forward.1} parent=1 // pred_fallthru
      _
    // Predicated region
    $region106: #{generator3d_forward.1} parent=1 // pred_check
      _
    $region107: #{generator3d_forward.1} parent=1 // pred_check_branch
      %221 = sbr.rel (0) target = $region109
    $region108: #{generator3d_forward.1} parent=1 // pred_region
      %223 = dma.done [#allocation14], 32
    $region109: #{generator3d_forward.1} parent=1 // pred_fallthru
      _
    // Predicated region
    $region110: #{generator3d_forward.1} parent=1 // pred_check
      _
    $region111: #{generator3d_forward.1} parent=1 // pred_check_branch
      %225 = sbr.rel (0) target = $region113
    $region112: #{generator3d_forward.1} parent=1 // pred_region
      %227 = dma.done [#allocation17], 8192
    $region113: #{generator3d_forward.1} parent=1 // pred_fallthru
      _
    // Predicated region
    $region114: #{generator3d_forward.1} parent=1 // pred_check
      _
    $region115: #{generator3d_forward.1} parent=1 // pred_check_branch
      %229 = sbr.rel (0) target = $region117
    $region116: #{generator3d_forward.1} parent=1 // pred_region
      %231 = dma.done [#allocation17], 64
    $region117: #{generator3d_forward.1} parent=1 // pred_fallthru
      _
    // Predicated region
    $region118: #{generator3d_forward.1} parent=1 // pred_check
      _
    $region119: #{generator3d_forward.1} parent=1 // pred_check_branch
      %233 = sbr.rel (0) target = $region121
    $region120: #{generator3d_forward.1} parent=1 // pred_region
      %235 = dma.done [#allocation20], 16
    $region121: #{generator3d_forward.1} parent=1 // pred_fallthru
      _
    %v237 = vld [vmem:[#allocation2] sm:$0x3]
    %v238 = vpack.c.bf16 %v237, %v237
    %v239 = vld [vmem:[#allocation4] sm:$0xf]
    %v240 = vld [vmem:[#allocation4 + $0x4] sm:$0xf]
    %v241 = vld [vmem:[#allocation4 + $0x8] sm:$0xf]
    %v242 = vld [vmem:[#allocation4 + $0xc] sm:$0xf]
    %v243 = vld [vmem:[#allocation4 + $0x10] sm:$0xf]
    %v244 = vld [vmem:[#allocation4 + $0x14] sm:$0xf]
    %v245 = vld [vmem:[#allocation4 + $0x18] sm:$0xf]
    %v246 = vld [vmem:[#allocation4 + $0x1c] sm:$0xf]
    %v247 = vld [vmem:[%s2] sm:$0x1]
    %v249 = vperm.slane %v247, 0
    %v259 = vunpack.c.l.b16 %v239
    %v260 = vunpack.c.l.b16 %v240
    %v261 = vunpack.c.l.b16 %v241
    %v262 = vunpack.c.l.b16 %v242
    %v263 = vunpack.c.l.b16 %v243
    %v264 = vunpack.c.l.b16 %v244
    %v265 = vunpack.c.l.b16 %v245
    %v266 = vunpack.c.l.b16 %v246
    %v267 = vpack.c.b16 %v260, %v259
    %v268 = vpack.c.b16 %v262, %v261
    %v269 = vpack.c.b16 %v264, %v263
    %v270 = vpack.c.b16 %v266, %v265
    %vm275 = vcmask 523264
    %v277 = vsel %vm275, %v238, 0
    %279 = vmatpush.bf16.msra.mxu0 0
    %280 = vmatpush.bf16.msra.mxu0 0
    %281 = vmatpush.bf16.msra.mxu0 0
    %282 = vmatpush.bf16.msra.mxu0 0
    %283 = vmatpush.bf16.msra.mxu0 %v270
    %284 = vmatpush.bf16.msra.mxu0 %v269
    %285 = vmatpush.bf16.msra.mxu0 %v268
    %286 = vmatpush.bf16.msra.mxu0 %v267
    %287 = vmatmul.bf16.gmra.mxu0 %v277
    %v288 = vpop.f32.mrf.mxu0
    %v289 = vadd.f32 %v249, %v288
    %v290 = vpop.f32.mrf.mxu0
    %291 = vdwg.mxu0
    %v292 = vmul.f32 %v289, 0.2
    %v293 = vmax.f32 %v289, %v292
    %v294 = vpack.c.bf16 %v293, %v293
    %v295 = vld [vmem:[#allocation6] sm:$0xff]
    %v296 = vld [vmem:[#allocation6 + $0x8] sm:$0xff]
    %v297 = vld [vmem:[#allocation6 + $0x10] sm:$0xff]
    %v298 = vld [vmem:[#allocation6 + $0x18] sm:$0xff]
    %v299 = vld [vmem:[#allocation6 + $0x20] sm:$0xff]
    %v300 = vld [vmem:[#allocation6 + $0x28] sm:$0xff]
    %v301 = vld [vmem:[#allocation6 + $0x30] sm:$0xff]
    %v302 = vld [vmem:[#allocation6 + $0x38] sm:$0xff]
    %v303 = vld [vmem:[#allocation6 + $0x40] sm:$0xff]
    %v304 = vld [vmem:[#allocation6 + $0x48] sm:$0xff]
    %v305 = vld [vmem:[#allocation6 + $0x50] sm:$0xff]
    %v306 = vld [vmem:[#allocation6 + $0x58] sm:$0xff]
    %v307 = vld [vmem:[#allocation6 + $0x60] sm:$0xff]
    %v308 = vld [vmem:[#allocation6 + $0x68] sm:$0xff]
    %v309 = vld [vmem:[#allocation6 + $0x70] sm:$0xff]
    %v310 = vld [vmem:[#allocation6 + $0x78] sm:$0xff]
    %v311 = vld [vmem:[#allocation7] sm:$0x3]
    %v313 = vperm.slane %v311, 0
    %v314 = vperm.slane %v311, 1
    %v333 = vunpack.c.l.b16 %v295
    %v334 = vunpack.c.h.b16 %v295
    %v335 = vunpack.c.l.b16 %v296
    %v336 = vunpack.c.h.b16 %v296
    %v337 = vunpack.c.l.b16 %v297
    %v338 = vunpack.c.h.b16 %v297
    %v339 = vunpack.c.l.b16 %v298
    %v340 = vunpack.c.h.b16 %v298
    %v341 = vunpack.c.l.b16 %v299
    %v342 = vunpack.c.h.b16 %v299
    %v343 = vunpack.c.l.b16 %v300
    %v344 = vunpack.c.h.b16 %v300
    %v345 = vunpack.c.l.b16 %v301
    %v346 = vunpack.c.h.b16 %v301
    %v347 = vunpack.c.l.b16 %v302
    %v348 = vunpack.c.h.b16 %v302
    %v349 = vunpack.c.l.b16 %v303
    %v350 = vunpack.c.h.b16 %v303
    %v351 = vunpack.c.l.b16 %v304
    %v352 = vunpack.c.h.b16 %v304
    %v353 = vunpack.c.l.b16 %v305
    %v354 = vunpack.c.h.b16 %v305
    %v355 = vunpack.c.l.b16 %v306
    %v356 = vunpack.c.h.b16 %v306
    %v357 = vunpack.c.l.b16 %v307
    %v358 = vunpack.c.h.b16 %v307
    %v359 = vunpack.c.l.b16 %v308
    %v360 = vunpack.c.h.b16 %v308
    %v361 = vunpack.c.l.b16 %v309
    %v362 = vunpack.c.h.b16 %v309
    %v363 = vunpack.c.l.b16 %v310
    %v364 = vunpack.c.h.b16 %v310
    %v365 = vpack.c.b16 %v335, %v333
    %v366 = vpack.c.b16 %v336, %v334
    %v367 = vpack.c.b16 %v339, %v337
    %v368 = vpack.c.b16 %v340, %v338
    %v369 = vpack.c.b16 %v343, %v341
    %v370 = vpack.c.b16 %v344, %v342
    %v371 = vpack.c.b16 %v347, %v345
    %v372 = vpack.c.b16 %v348, %v346
    %v373 = vpack.c.b16 %v351, %v349
    %v374 = vpack.c.b16 %v352, %v350
    %v375 = vpack.c.b16 %v355, %v353
    %v376 = vpack.c.b16 %v356, %v354
    %v377 = vpack.c.b16 %v359, %v357
    %v378 = vpack.c.b16 %v360, %v358
    %v379 = vpack.c.b16 %v363, %v361
    %v380 = vpack.c.b16 %v364, %v362
    %397 = vmatpush.bf16.msra.mxu0 %v379
    %398 = vmatpush.bf16.msra.mxu0 %v377
    %399 = vmatpush.bf16.msra.mxu0 %v375
    %400 = vmatpush.bf16.msra.mxu0 %v373
    %401 = vmatpush.bf16.msra.mxu0 %v371
    %402 = vmatpush.bf16.msra.mxu0 %v369
    %403 = vmatpush.bf16.msra.mxu0 %v367
    %404 = vmatpush.bf16.msra.mxu0 %v365
    %405 = vmatmul.bf16.gmra.mxu0 %v294
    %v406 = vpop.f32.mrf.mxu0
    %v407 = vadd.f32 %v313, %v406
    %v408 = vpop.f32.mrf.mxu0
    %409 = vdwg.mxu0
    %410 = vmatpush.bf16.msra.mxu0 %v380
    %411 = vmatpush.bf16.msra.mxu0 %v378
    %412 = vmatpush.bf16.msra.mxu0 %v376
    %413 = vmatpush.bf16.msra.mxu0 %v374
    %414 = vmatpush.bf16.msra.mxu0 %v372
    %415 = vmatpush.bf16.msra.mxu0 %v370
    %416 = vmatpush.bf16.msra.mxu0 %v368
    %417 = vmatpush.bf16.msra.mxu0 %v366
    %418 = vmatmul.bf16.gmra.mxu0 %v294
    %v419 = vpop.f32.mrf.mxu0
    %v420 = vadd.f32 %v314, %v419
    %v421 = vpop.f32.mrf.mxu0
    %422 = vdwg.mxu0
    %v423 = vmul.f32 %v407, 0.2
    %v424 = vmul.f32 %v420, 0.2
    %v425 = vmax.f32 %v407, %v423
    %v426 = vmax.f32 %v420, %v424
    %v427 = vpack.c.bf16 %v425, %v425
    %v428 = vpack.c.bf16 %v426, %v426
    %v429 = vld [vmem:[%s5] sm:$0xff]
    %v430 = vld [vmem:[%s5 + $0x8] sm:$0xff]
    %v431 = vld [vmem:[%s5 + $0x10] sm:$0xff]
    %v432 = vld [vmem:[%s5 + $0x18] sm:$0xff]
    %v433 = vld [vmem:[%s5 + $0x20] sm:$0xff]
    %v434 = vld [vmem:[%s5 + $0x28] sm:$0xff]
    %v435 = vld [vmem:[%s5 + $0x30] sm:$0xff]
    %v436 = vld [vmem:[%s5 + $0x38] sm:$0xff]
    %v437 = vld [vmem:[%s5 + $0x40] sm:$0xff]
    %v438 = vld [vmem:[%s5 + $0x48] sm:$0xff]
    %v439 = vld [vmem:[%s5 + $0x50] sm:$0xff]
    %v440 = vld [vmem:[%s5 + $0x58] sm:$0xff]
    %v441 = vld [vmem:[%s5 + $0x60] sm:$0xff]
    %v442 = vld [vmem:[%s5 + $0x68] sm:$0xff]
    %v443 = vld [vmem:[%s5 + $0x70] sm:$0xff]
    %v444 = vld [vmem:[%s5 + $0x78] sm:$0xff]
    %v445 = vld [vmem:[%s5 + $0x80] sm:$0xff]
    %v446 = vld [vmem:[%s5 + $0x88] sm:$0xff]
    %v447 = vld [vmem:[%s5 + $0x90] sm:$0xff]
    %v448 = vld [vmem:[%s5 + $0x98] sm:$0xff]
    %v449 = vld [vmem:[%s5 + $0xa0] sm:$0xff]
    %v450 = vld [vmem:[%s5 + $0xa8] sm:$0xff]
    %v451 = vld [vmem:[%s5 + $0xb0] sm:$0xff]
    %v452 = vld [vmem:[%s5 + $0xb8] sm:$0xff]
    %v453 = vld [vmem:[%s5 + $0xc0] sm:$0xff]
    %v454 = vld [vmem:[%s5 + $0xc8] sm:$0xff]
    %v455 = vld [vmem:[%s5 + $0xd0] sm:$0xff]
    %v456 = vld [vmem:[%s5 + $0xd8] sm:$0xff]
    %v457 = vld [vmem:[%s5 + $0xe0] sm:$0xff]
    %v458 = vld [vmem:[%s5 + $0xe8] sm:$0xff]
    %v459 = vld [vmem:[%s5 + $0xf0] sm:$0xff]
    %v460 = vld [vmem:[%s5 + $0xf8] sm:$0xff]
    %v461 = vld [vmem:[%s5 + $0x100] sm:$0xff]
    %v462 = vld [vmem:[%s5 + $0x108] sm:$0xff]
    %v463 = vld [vmem:[%s5 + $0x110] sm:$0xff]
    %v464 = vld [vmem:[%s5 + $0x118] sm:$0xff]
    %v465 = vld [vmem:[%s5 + $0x120] sm:$0xff]
    %v466 = vld [vmem:[%s5 + $0x128] sm:$0xff]
    %v467 = vld [vmem:[%s5 + $0x130] sm:$0xff]
    %v468 = vld [vmem:[%s5 + $0x138] sm:$0xff]
    %v469 = vld [vmem:[%s5 + $0x140] sm:$0xff]
    %v470 = vld [vmem:[%s5 + $0x148] sm:$0xff]
    %v471 = vld [vmem:[%s5 + $0x150] sm:$0xff]
    %v472 = vld [vmem:[%s5 + $0x158] sm:$0xff]
    %v473 = vld [vmem:[%s5 + $0x160] sm:$0xff]
    %v474 = vld [vmem:[%s5 + $0x168] sm:$0xff]
    %v475 = vld [vmem:[%s5 + $0x170] sm:$0xff]
    %v476 = vld [vmem:[%s5 + $0x178] sm:$0xff]
    %v477 = vld [vmem:[%s5 + $0x180] sm:$0xff]
    %v478 = vld [vmem:[%s5 + $0x188] sm:$0xff]
    %v479 = vld [vmem:[%s5 + $0x190] sm:$0xff]
    %v480 = vld [vmem:[%s5 + $0x198] sm:$0xff]
    %v481 = vld [vmem:[%s5 + $0x1a0] sm:$0xff]
    %v482 = vld [vmem:[%s5 + $0x1a8] sm:$0xff]
    %v483 = vld [vmem:[%s5 + $0x1b0] sm:$0xff]
    %v484 = vld [vmem:[%s5 + $0x1b8] sm:$0xff]
    %v485 = vld [vmem:[%s5 + $0x1c0] sm:$0xff]
    %v486 = vld [vmem:[%s5 + $0x1c8] sm:$0xff]
    %v487 = vld [vmem:[%s5 + $0x1d0] sm:$0xff]
    %v488 = vld [vmem:[%s5 + $0x1d8] sm:$0xff]
    %v489 = vld [vmem:[%s5 + $0x1e0] sm:$0xff]
    %v490 = vld [vmem:[%s5 + $0x1e8] sm:$0xff]
    %v491 = vld [vmem:[%s5 + $0x1f0] sm:$0xff]
    %v492 = vld [vmem:[%s5 + $0x1f8] sm:$0xff]
    %v493 = vld [vmem:[%s6] sm:$0xf]
    %v495 = vperm.slane %v493, 0
    %v496 = vperm.slane %v493, 1
    %v497 = vperm.slane %v493, 2
    %v498 = vperm.slane %v493, 3
    %v567 = vunpack.c.l.b16 %v429
    %v568 = vunpack.c.h.b16 %v429
    %v569 = vunpack.c.l.b16 %v430
    %v570 = vunpack.c.h.b16 %v430
    %v571 = vunpack.c.l.b16 %v431
    %v572 = vunpack.c.h.b16 %v431
    %v573 = vunpack.c.l.b16 %v432
    %v574 = vunpack.c.h.b16 %v432
    %v575 = vunpack.c.l.b16 %v433
    %v576 = vunpack.c.h.b16 %v433
    %v577 = vunpack.c.l.b16 %v434
    %v578 = vunpack.c.h.b16 %v434
    %v579 = vunpack.c.l.b16 %v435
    %v580 = vunpack.c.h.b16 %v435
    %v581 = vunpack.c.l.b16 %v436
    %v582 = vunpack.c.h.b16 %v436
    %v583 = vunpack.c.l.b16 %v437
    %v584 = vunpack.c.h.b16 %v437
    %v585 = vunpack.c.l.b16 %v438
    %v586 = vunpack.c.h.b16 %v438
    %v587 = vunpack.c.l.b16 %v439
    %v588 = vunpack.c.h.b16 %v439
    %v589 = vunpack.c.l.b16 %v440
    %v590 = vunpack.c.h.b16 %v440
    %v591 = vunpack.c.l.b16 %v441
    %v592 = vunpack.c.h.b16 %v441
    %v593 = vunpack.c.l.b16 %v442
    %v594 = vunpack.c.h.b16 %v442
    %v595 = vunpack.c.l.b16 %v443
    %v596 = vunpack.c.h.b16 %v443
    %v597 = vunpack.c.l.b16 %v444
    %v598 = vunpack.c.h.b16 %v444
    %v599 = vunpack.c.l.b16 %v445
    %v600 = vunpack.c.h.b16 %v445
    %v601 = vunpack.c.l.b16 %v446
    %v602 = vunpack.c.h.b16 %v446
    %v603 = vunpack.c.l.b16 %v447
    %v604 = vunpack.c.h.b16 %v447
    %v605 = vunpack.c.l.b16 %v448
    %v606 = vunpack.c.h.b16 %v448
    %v607 = vunpack.c.l.b16 %v449
    %v608 = vunpack.c.h.b16 %v449
    %v609 = vunpack.c.l.b16 %v450
    %v610 = vunpack.c.h.b16 %v450
    %v611 = vunpack.c.l.b16 %v451
    %v612 = vunpack.c.h.b16 %v451
    %v613 = vunpack.c.l.b16 %v452
    %v614 = vunpack.c.h.b16 %v452
    %v615 = vunpack.c.l.b16 %v453
    %v616 = vunpack.c.h.b16 %v453
    %v617 = vunpack.c.l.b16 %v454
    %v618 = vunpack.c.h.b16 %v454
    %v619 = vunpack.c.l.b16 %v455
    %v620 = vunpack.c.h.b16 %v455
    %v621 = vunpack.c.l.b16 %v456
    %v622 = vunpack.c.h.b16 %v456
    %v623 = vunpack.c.l.b16 %v457
    %v624 = vunpack.c.h.b16 %v457
    %v625 = vunpack.c.l.b16 %v458
    %v626 = vunpack.c.h.b16 %v458
    %v627 = vunpack.c.l.b16 %v459
    %v628 = vunpack.c.h.b16 %v459
    %v629 = vunpack.c.l.b16 %v460
    %v630 = vunpack.c.h.b16 %v460
    %v631 = vunpack.c.l.b16 %v461
    %v632 = vunpack.c.h.b16 %v461
    %v633 = vunpack.c.l.b16 %v462
    %v634 = vunpack.c.h.b16 %v462
    %v635 = vunpack.c.l.b16 %v463
    %v636 = vunpack.c.h.b16 %v463
    %v637 = vunpack.c.l.b16 %v464
    %v638 = vunpack.c.h.b16 %v464
    %v639 = vunpack.c.l.b16 %v465
    %v640 = vunpack.c.h.b16 %v465
    %v641 = vunpack.c.l.b16 %v466
    %v642 = vunpack.c.h.b16 %v466
    %v643 = vunpack.c.l.b16 %v467
    %v644 = vunpack.c.h.b16 %v467
    %v645 = vunpack.c.l.b16 %v468
    %v646 = vunpack.c.h.b16 %v468
    %v647 = vunpack.c.l.b16 %v469
    %v648 = vunpack.c.h.b16 %v469
    %v649 = vunpack.c.l.b16 %v470
    %v650 = vunpack.c.h.b16 %v470
    %v651 = vunpack.c.l.b16 %v471
    %v652 = vunpack.c.h.b16 %v471
    %v653 = vunpack.c.l.b16 %v472
    %v654 = vunpack.c.h.b16 %v472
    %v655 = vunpack.c.l.b16 %v473
    %v656 = vunpack.c.h.b16 %v473
    %v657 = vunpack.c.l.b16 %v474
    %v658 = vunpack.c.h.b16 %v474
    %v659 = vunpack.c.l.b16 %v475
    %v660 = vunpack.c.h.b16 %v475
    %v661 = vunpack.c.l.b16 %v476
    %v662 = vunpack.c.h.b16 %v476
    %v663 = vunpack.c.l.b16 %v477
    %v664 = vunpack.c.h.b16 %v477
    %v665 = vunpack.c.l.b16 %v478
    %v666 = vunpack.c.h.b16 %v478
    %v667 = vunpack.c.l.b16 %v479
    %v668 = vunpack.c.h.b16 %v479
    %v669 = vunpack.c.l.b16 %v480
    %v670 = vunpack.c.h.b16 %v480
    %v671 = vunpack.c.l.b16 %v481
    %v672 = vunpack.c.h.b16 %v481
    %v673 = vunpack.c.l.b16 %v482
    %v674 = vunpack.c.h.b16 %v482
    %v675 = vunpack.c.l.b16 %v483
    %v676 = vunpack.c.h.b16 %v483
    %v677 = vunpack.c.l.b16 %v484
    %v678 = vunpack.c.h.b16 %v484
    %v679 = vunpack.c.l.b16 %v485
    %v680 = vunpack.c.h.b16 %v485
    %v681 = vunpack.c.l.b16 %v486
    %v682 = vunpack.c.h.b16 %v486
    %v683 = vunpack.c.l.b16 %v487
    %v684 = vunpack.c.h.b16 %v487
    %v685 = vunpack.c.l.b16 %v488
    %v686 = vunpack.c.h.b16 %v488
    %v687 = vunpack.c.l.b16 %v489
    %v688 = vunpack.c.h.b16 %v489
    %v689 = vunpack.c.l.b16 %v490
    %v690 = vunpack.c.h.b16 %v490
    %v691 = vunpack.c.l.b16 %v491
    %v692 = vunpack.c.h.b16 %v491
    %v693 = vunpack.c.l.b16 %v492
    %v694 = vunpack.c.h.b16 %v492
    %v695 = vpack.c.b16 %v571, %v567
    %v696 = vpack.c.b16 %v572, %v568
    %v697 = vpack.c.b16 %v573, %v569
    %v698 = vpack.c.b16 %v574, %v570
    %v699 = vpack.c.b16 %v579, %v575
    %v700 = vpack.c.b16 %v580, %v576
    %v701 = vpack.c.b16 %v581, %v577
    %v702 = vpack.c.b16 %v582, %v578
    %v703 = vpack.c.b16 %v587, %v583
    %v704 = vpack.c.b16 %v588, %v584
    %v705 = vpack.c.b16 %v589, %v585
    %v706 = vpack.c.b16 %v590, %v586
    %v707 = vpack.c.b16 %v595, %v591
    %v708 = vpack.c.b16 %v596, %v592
    %v709 = vpack.c.b16 %v597, %v593
    %v710 = vpack.c.b16 %v598, %v594
    %v711 = vpack.c.b16 %v603, %v599
    %v712 = vpack.c.b16 %v604, %v600
    %v713 = vpack.c.b16 %v605, %v601
    %v714 = vpack.c.b16 %v606, %v602
    %v715 = vpack.c.b16 %v611, %v607
    %v716 = vpack.c.b16 %v612, %v608
    %v717 = vpack.c.b16 %v613, %v609
    %v718 = vpack.c.b16 %v614, %v610
    %v719 = vpack.c.b16 %v619, %v615
    %v720 = vpack.c.b16 %v620, %v616
    %v721 = vpack.c.b16 %v621, %v617
    %v722 = vpack.c.b16 %v622, %v618
    %v723 = vpack.c.b16 %v627, %v623
    %v724 = vpack.c.b16 %v628, %v624
    %v725 = vpack.c.b16 %v629, %v625
    %v726 = vpack.c.b16 %v630, %v626
    %v727 = vpack.c.b16 %v635, %v631
    %v728 = vpack.c.b16 %v636, %v632
    %v729 = vpack.c.b16 %v637, %v633
    %v730 = vpack.c.b16 %v638, %v634
    %v731 = vpack.c.b16 %v643, %v639
    %v732 = vpack.c.b16 %v644, %v640
    %v733 = vpack.c.b16 %v645, %v641
    %v734 = vpack.c.b16 %v646, %v642
    %v735 = vpack.c.b16 %v651, %v647
    %v736 = vpack.c.b16 %v652, %v648
    %v737 = vpack.c.b16 %v653, %v649
    %v738 = vpack.c.b16 %v654, %v650
    %v739 = vpack.c.b16 %v659, %v655
    %v740 = vpack.c.b16 %v660, %v656
    %v741 = vpack.c.b16 %v661, %v657
    %v742 = vpack.c.b16 %v662, %v658
    %v743 = vpack.c.b16 %v667, %v663
    %v744 = vpack.c.b16 %v668, %v664
    %v745 = vpack.c.b16 %v669, %v665
    %v746 = vpack.c.b16 %v670, %v666
    %v747 = vpack.c.b16 %v675, %v671
    %v748 = vpack.c.b16 %v676, %v672
    %v749 = vpack.c.b16 %v677, %v673
    %v750 = vpack.c.b16 %v678, %v674
    %v751 = vpack.c.b16 %v683, %v679
    %v752 = vpack.c.b16 %v684, %v680
    %v753 = vpack.c.b16 %v685, %v681
    %v754 = vpack.c.b16 %v686, %v682
    %v755 = vpack.c.b16 %v691, %v687
    %v756 = vpack.c.b16 %v692, %v688
    %v757 = vpack.c.b16 %v693, %v689
    %v758 = vpack.c.b16 %v694, %v690
    %823 = vmatpush.bf16.msra.mxu0 %v723
    %824 = vmatpush.bf16.msra.mxu0 %v719
    %825 = vmatpush.bf16.msra.mxu0 %v715
    %826 = vmatpush.bf16.msra.mxu0 %v711
    %827 = vmatpush.bf16.msra.mxu0 %v707
    %828 = vmatpush.bf16.msra.mxu0 %v703
    %829 = vmatpush.bf16.msra.mxu0 %v699
    %830 = vmatpush.bf16.msra.mxu0 %v695
    %831 = vmatmul.bf16.gmra.mxu0 %v427
    %v832 = vpop.f32.mrf.mxu0
    %v833 = vadd.f32 %v495, %v832
    %v834 = vpop.f32.mrf.mxu0
    %835 = vdwg.mxu0
    %836 = vmatpush.bf16.msra.mxu0 %v755
    %837 = vmatpush.bf16.msra.mxu0 %v751
    %838 = vmatpush.bf16.msra.mxu0 %v747
    %839 = vmatpush.bf16.msra.mxu0 %v743
    %840 = vmatpush.bf16.msra.mxu0 %v739
    %841 = vmatpush.bf16.msra.mxu0 %v735
    %842 = vmatpush.bf16.msra.mxu0 %v731
    %843 = vmatpush.bf16.msra.mxu0 %v727
    %844 = vmatmul.bf16.gmra.mxu0 %v428
    %v845 = vpop.f32.mrf.mxu0
    %v846 = vadd.f32 %v833, %v845
    %v847 = vpop.f32.mrf.mxu0
    %848 = vdwg.mxu0
    %849 = vmatpush.bf16.msra.mxu0 %v724
    %850 = vmatpush.bf16.msra.mxu0 %v720
    %851 = vmatpush.bf16.msra.mxu0 %v716
    %852 = vmatpush.bf16.msra.mxu0 %v712
    %853 = vmatpush.bf16.msra.mxu0 %v708
    %854 = vmatpush.bf16.msra.mxu0 %v704
    %855 = vmatpush.bf16.msra.mxu0 %v700
    %856 = vmatpush.bf16.msra.mxu0 %v696
    %857 = vmatmul.bf16.gmra.mxu0 %v427
    %v858 = vpop.f32.mrf.mxu0
    %v859 = vadd.f32 %v496, %v858
    %v860 = vpop.f32.mrf.mxu0
    %861 = vdwg.mxu0
    %862 = vmatpush.bf16.msra.mxu0 %v756
    %863 = vmatpush.bf16.msra.mxu0 %v752
    %864 = vmatpush.bf16.msra.mxu0 %v748
    %865 = vmatpush.bf16.msra.mxu0 %v744
    %866 = vmatpush.bf16.msra.mxu0 %v740
    %867 = vmatpush.bf16.msra.mxu0 %v736
    %868 = vmatpush.bf16.msra.mxu0 %v732
    %869 = vmatpush.bf16.msra.mxu0 %v728
    %870 = vmatmul.bf16.gmra.mxu0 %v428
    %v871 = vpop.f32.mrf.mxu0
    %v872 = vadd.f32 %v859, %v871
    %v873 = vpop.f32.mrf.mxu0
    %874 = vdwg.mxu0
    %875 = vmatpush.bf16.msra.mxu0 %v725
    %876 = vmatpush.bf16.msra.mxu0 %v721
    %877 = vmatpush.bf16.msra.mxu0 %v717
    %878 = vmatpush.bf16.msra.mxu0 %v713
    %879 = vmatpush.bf16.msra.mxu0 %v709
    %880 = vmatpush.bf16.msra.mxu0 %v705
    %881 = vmatpush.bf16.msra.mxu0 %v701
    %882 = vmatpush.bf16.msra.mxu0 %v697
    %883 = vmatmul.bf16.gmra.mxu0 %v427
    %v884 = vpop.f32.mrf.mxu0
    %v885 = vadd.f32 %v497, %v884
    %v886 = vpop.f32.mrf.mxu0
    %887 = vdwg.mxu0
    %888 = vmatpush.bf16.msra.mxu0 %v757
    %889 = vmatpush.bf16.msra.mxu0 %v753
    %890 = vmatpush.bf16.msra.mxu0 %v749
    %891 = vmatpush.bf16.msra.mxu0 %v745
    %892 = vmatpush.bf16.msra.mxu0 %v741
    %893 = vmatpush.bf16.msra.mxu0 %v737
    %894 = vmatpush.bf16.msra.mxu0 %v733
    %895 = vmatpush.bf16.msra.mxu0 %v729
    %896 = vmatmul.bf16.gmra.mxu0 %v428
    %v897 = vpop.f32.mrf.mxu0
    %v898 = vadd.f32 %v885, %v897
    %v899 = vpop.f32.mrf.mxu0
    %900 = vdwg.mxu0
    %901 = vmatpush.bf16.msra.mxu0 %v726
    %902 = vmatpush.bf16.msra.mxu0 %v722
    %903 = vmatpush.bf16.msra.mxu0 %v718
    %904 = vmatpush.bf16.msra.mxu0 %v714
    %905 = vmatpush.bf16.msra.mxu0 %v710
    %906 = vmatpush.bf16.msra.mxu0 %v706
    %907 = vmatpush.bf16.msra.mxu0 %v702
    %908 = vmatpush.bf16.msra.mxu0 %v698
    %909 = vmatmul.bf16.gmra.mxu0 %v427
    %v910 = vpop.f32.mrf.mxu0
    %v911 = vadd.f32 %v498, %v910
    %v912 = vpop.f32.mrf.mxu0
    %913 = vdwg.mxu0
    %914 = vmatpush.bf16.msra.mxu0 %v758
    %915 = vmatpush.bf16.msra.mxu0 %v754
    %916 = vmatpush.bf16.msra.mxu0 %v750
    %917 = vmatpush.bf16.msra.mxu0 %v746
    %918 = vmatpush.bf16.msra.mxu0 %v742
    %919 = vmatpush.bf16.msra.mxu0 %v738
    %920 = vmatpush.bf16.msra.mxu0 %v734
    %921 = vmatpush.bf16.msra.mxu0 %v730
    %922 = vmatmul.bf16.gmra.mxu0 %v428
    %v923 = vpop.f32.mrf.mxu0
    %v924 = vadd.f32 %v911, %v923
    %v925 = vpop.f32.mrf.mxu0
    %926 = vdwg.mxu0
    %v927 = vmul.f32 %v846, 0.2
    %v928 = vmul.f32 %v872, 0.2
    %v929 = vmul.f32 %v898, 0.2
    %v930 = vmul.f32 %v924, 0.2
    %v931 = vmax.f32 %v846, %v927
    %v932 = vmax.f32 %v872, %v928
    %v933 = vmax.f32 %v898, %v929
    %v934 = vmax.f32 %v924, %v930
    %v935 = vpack.c.bf16 %v931, %v931
    %v936 = vpack.c.bf16 %v932, %v932
    %v937 = vpack.c.bf16 %v933, %v933
    %v938 = vpack.c.bf16 %v934, %v934
    %v939 = vld [vmem:[%s7] sm:$0xf]
    %v940 = vld [vmem:[%s7 + $0x4] sm:$0xf]
    %v941 = vld [vmem:[%s7 + $0x8] sm:$0xf]
    %v942 = vld [vmem:[%s7 + $0xc] sm:$0xf]
    %v943 = vld [vmem:[%s7 + $0x10] sm:$0xf]
    %v944 = vld [vmem:[%s7 + $0x14] sm:$0xf]
    %v945 = vld [vmem:[%s7 + $0x18] sm:$0xf]
    %v946 = vld [vmem:[%s7 + $0x1c] sm:$0xf]
    %v947 = vld [vmem:[%s7 + $0x20] sm:$0xf]
    %v948 = vld [vmem:[%s7 + $0x24] sm:$0xf]
    %v949 = vld [vmem:[%s7 + $0x28] sm:$0xf]
    %v950 = vld [vmem:[%s7 + $0x2c] sm:$0xf]
    %v951 = vld [vmem:[%s7 + $0x30] sm:$0xf]
    %v952 = vld [vmem:[%s7 + $0x34] sm:$0xf]
    %v953 = vld [vmem:[%s7 + $0x38] sm:$0xf]
    %v954 = vld [vmem:[%s7 + $0x3c] sm:$0xf]
    %v955 = vld [vmem:[%s7 + $0x40] sm:$0xf]
    %v956 = vld [vmem:[%s7 + $0x44] sm:$0xf]
    %v957 = vld [vmem:[%s7 + $0x48] sm:$0xf]
    %v958 = vld [vmem:[%s7 + $0x4c] sm:$0xf]
    %v959 = vld [vmem:[%s7 + $0x50] sm:$0xf]
    %v960 = vld [vmem:[%s7 + $0x54] sm:$0xf]
    %v961 = vld [vmem:[%s7 + $0x58] sm:$0xf]
    %v962 = vld [vmem:[%s7 + $0x5c] sm:$0xf]
    %v963 = vld [vmem:[%s7 + $0x60] sm:$0xf]
    %v964 = vld [vmem:[%s7 + $0x64] sm:$0xf]
    %v965 = vld [vmem:[%s7 + $0x68] sm:$0xf]
    %v966 = vld [vmem:[%s7 + $0x6c] sm:$0xf]
    %v967 = vld [vmem:[%s7 + $0x70] sm:$0xf]
    %v968 = vld [vmem:[%s7 + $0x74] sm:$0xf]
    %v969 = vld [vmem:[%s7 + $0x78] sm:$0xf]
    %v970 = vld [vmem:[%s7 + $0x7c] sm:$0xf]
    %v971 = vld [vmem:[%s7 + $0x80] sm:$0xf]
    %v972 = vld [vmem:[%s7 + $0x84] sm:$0xf]
    %v973 = vld [vmem:[%s7 + $0x88] sm:$0xf]
    %v974 = vld [vmem:[%s7 + $0x8c] sm:$0xf]
    %v975 = vld [vmem:[%s7 + $0x90] sm:$0xf]
    %v976 = vld [vmem:[%s7 + $0x94] sm:$0xf]
    %v977 = vld [vmem:[%s7 + $0x98] sm:$0xf]
    %v978 = vld [vmem:[%s7 + $0x9c] sm:$0xf]
    %v979 = vld [vmem:[%s7 + $0xa0] sm:$0xf]
    %v980 = vld [vmem:[%s7 + $0xa4] sm:$0xf]
    %v981 = vld [vmem:[%s7 + $0xa8] sm:$0xf]
    %v982 = vld [vmem:[%s7 + $0xac] sm:$0xf]
    %v983 = vld [vmem:[%s7 + $0xb0] sm:$0xf]
    %v984 = vld [vmem:[%s7 + $0xb4] sm:$0xf]
    %v985 = vld [vmem:[%s7 + $0xb8] sm:$0xf]
    %v986 = vld [vmem:[%s7 + $0xbc] sm:$0xf]
    %v987 = vld [vmem:[%s7 + $0xc0] sm:$0xf]
    %v988 = vld [vmem:[%s7 + $0xc4] sm:$0xf]
    %v989 = vld [vmem:[%s7 + $0xc8] sm:$0xf]
    %v990 = vld [vmem:[%s7 + $0xcc] sm:$0xf]
    %v991 = vld [vmem:[%s7 + $0xd0] sm:$0xf]
    %v992 = vld [vmem:[%s7 + $0xd4] sm:$0xf]
    %v993 = vld [vmem:[%s7 + $0xd8] sm:$0xf]
    %v994 = vld [vmem:[%s7 + $0xdc] sm:$0xf]
    %v995 = vld [vmem:[%s7 + $0xe0] sm:$0xf]
    %v996 = vld [vmem:[%s7 + $0xe4] sm:$0xf]
    %v997 = vld [vmem:[%s7 + $0xe8] sm:$0xf]
    %v998 = vld [vmem:[%s7 + $0xec] sm:$0xf]
    %v999 = vld [vmem:[%s7 + $0xf0] sm:$0xf]
    %v1000 = vld [vmem:[%s7 + $0xf4] sm:$0xf]
    %v1001 = vld [vmem:[%s7 + $0xf8] sm:$0xf]
    %v1002 = vld [vmem:[%s7 + $0xfc] sm:$0xf]
    %v1003 = vld [vmem:[#allocation9] sm:$0x1]
    %v1005 = vperm.slane %v1003, 0
    %v1071 = vunpack.c.l.b16 %v939
    %v1072 = vunpack.c.l.b16 %v940
    %v1073 = vunpack.c.l.b16 %v941
    %v1074 = vunpack.c.l.b16 %v942
    %v1075 = vunpack.c.l.b16 %v943
    %v1076 = vunpack.c.l.b16 %v944
    %v1077 = vunpack.c.l.b16 %v945
    %v1078 = vunpack.c.l.b16 %v946
    %v1079 = vunpack.c.l.b16 %v947
    %v1080 = vunpack.c.l.b16 %v948
    %v1081 = vunpack.c.l.b16 %v949
    %v1082 = vunpack.c.l.b16 %v950
    %v1083 = vunpack.c.l.b16 %v951
    %v1084 = vunpack.c.l.b16 %v952
    %v1085 = vunpack.c.l.b16 %v953
    %v1086 = vunpack.c.l.b16 %v954
    %v1087 = vunpack.c.l.b16 %v955
    %v1088 = vunpack.c.l.b16 %v956
    %v1089 = vunpack.c.l.b16 %v957
    %v1090 = vunpack.c.l.b16 %v958
    %v1091 = vunpack.c.l.b16 %v959
    %v1092 = vunpack.c.l.b16 %v960
    %v1093 = vunpack.c.l.b16 %v961
    %v1094 = vunpack.c.l.b16 %v962
    %v1095 = vunpack.c.l.b16 %v963
    %v1096 = vunpack.c.l.b16 %v964
    %v1097 = vunpack.c.l.b16 %v965
    %v1098 = vunpack.c.l.b16 %v966
    %v1099 = vunpack.c.l.b16 %v967
    %v1100 = vunpack.c.l.b16 %v968
    %v1101 = vunpack.c.l.b16 %v969
    %v1102 = vunpack.c.l.b16 %v970
    %v1103 = vunpack.c.l.b16 %v971
    %v1104 = vunpack.c.l.b16 %v972
    %v1105 = vunpack.c.l.b16 %v973
    %v1106 = vunpack.c.l.b16 %v974
    %v1107 = vunpack.c.l.b16 %v975
    %v1108 = vunpack.c.l.b16 %v976
    %v1109 = vunpack.c.l.b16 %v977
    %v1110 = vunpack.c.l.b16 %v978
    %v1111 = vunpack.c.l.b16 %v979
    %v1112 = vunpack.c.l.b16 %v980
    %v1113 = vunpack.c.l.b16 %v981
    %v1114 = vunpack.c.l.b16 %v982
    %v1115 = vunpack.c.l.b16 %v983
    %v1116 = vunpack.c.l.b16 %v984
    %v1117 = vunpack.c.l.b16 %v985
    %v1118 = vunpack.c.l.b16 %v986
    %v1119 = vunpack.c.l.b16 %v987
    %v1120 = vunpack.c.l.b16 %v988
    %v1121 = vunpack.c.l.b16 %v989
    %v1122 = vunpack.c.l.b16 %v990
    %v1123 = vunpack.c.l.b16 %v991
    %v1124 = vunpack.c.l.b16 %v992
    %v1125 = vunpack.c.l.b16 %v993
    %v1126 = vunpack.c.l.b16 %v994
    %v1127 = vunpack.c.l.b16 %v995
    %v1128 = vunpack.c.l.b16 %v996
    %v1129 = vunpack.c.l.b16 %v997
    %v1130 = vunpack.c.l.b16 %v998
    %v1131 = vunpack.c.l.b16 %v999
    %v1132 = vunpack.c.l.b16 %v1000
    %v1133 = vunpack.c.l.b16 %v1001
    %v1134 = vunpack.c.l.b16 %v1002
    %v1135 = vpack.c.b16 %v1072, %v1071
    %v1136 = vpack.c.b16 %v1074, %v1073
    %v1137 = vpack.c.b16 %v1076, %v1075
    %v1138 = vpack.c.b16 %v1078, %v1077
    %v1139 = vpack.c.b16 %v1080, %v1079
    %v1140 = vpack.c.b16 %v1082, %v1081
    %v1141 = vpack.c.b16 %v1084, %v1083
    %v1142 = vpack.c.b16 %v1086, %v1085
    %v1143 = vpack.c.b16 %v1088, %v1087
    %v1144 = vpack.c.b16 %v1090, %v1089
    %v1145 = vpack.c.b16 %v1092, %v1091
    %v1146 = vpack.c.b16 %v1094, %v1093
    %v1147 = vpack.c.b16 %v1096, %v1095
    %v1148 = vpack.c.b16 %v1098, %v1097
    %v1149 = vpack.c.b16 %v1100, %v1099
    %v1150 = vpack.c.b16 %v1102, %v1101
    %v1151 = vpack.c.b16 %v1104, %v1103
    %v1152 = vpack.c.b16 %v1106, %v1105
    %v1153 = vpack.c.b16 %v1108, %v1107
    %v1154 = vpack.c.b16 %v1110, %v1109
    %v1155 = vpack.c.b16 %v1112, %v1111
    %v1156 = vpack.c.b16 %v1114, %v1113
    %v1157 = vpack.c.b16 %v1116, %v1115
    %v1158 = vpack.c.b16 %v1118, %v1117
    %v1159 = vpack.c.b16 %v1120, %v1119
    %v1160 = vpack.c.b16 %v1122, %v1121
    %v1161 = vpack.c.b16 %v1124, %v1123
    %v1162 = vpack.c.b16 %v1126, %v1125
    %v1163 = vpack.c.b16 %v1128, %v1127
    %v1164 = vpack.c.b16 %v1130, %v1129
    %v1165 = vpack.c.b16 %v1132, %v1131
    %v1166 = vpack.c.b16 %v1134, %v1133
    %1199 = vmatpush.bf16.msra.mxu0 %v1142
    %1200 = vmatpush.bf16.msra.mxu0 %v1141
    %1201 = vmatpush.bf16.msra.mxu0 %v1140
    %1202 = vmatpush.bf16.msra.mxu0 %v1139
    %1203 = vmatpush.bf16.msra.mxu0 %v1138
    %1204 = vmatpush.bf16.msra.mxu0 %v1137
    %1205 = vmatpush.bf16.msra.mxu0 %v1136
    %1206 = vmatpush.bf16.msra.mxu0 %v1135
    %1207 = vmatmul.bf16.gmra.mxu0 %v935
    %v1208 = vpop.f32.mrf.mxu0
    %v1209 = vadd.f32 %v1005, %v1208
    %v1210 = vpop.f32.mrf.mxu0
    %1211 = vdwg.mxu0
    %1212 = vmatpush.bf16.msra.mxu0 %v1150
    %1213 = vmatpush.bf16.msra.mxu0 %v1149
    %1214 = vmatpush.bf16.msra.mxu0 %v1148
    %1215 = vmatpush.bf16.msra.mxu0 %v1147
    %1216 = vmatpush.bf16.msra.mxu0 %v1146
    %1217 = vmatpush.bf16.msra.mxu0 %v1145
    %1218 = vmatpush.bf16.msra.mxu0 %v1144
    %1219 = vmatpush.bf16.msra.mxu0 %v1143
    %1220 = vmatmul.bf16.gmra.mxu0 %v936
    %v1221 = vpop.f32.mrf.mxu0
    %v1222 = vadd.f32 %v1209, %v1221
    %v1223 = vpop.f32.mrf.mxu0
    %1224 = vdwg.mxu0
    %1225 = vmatpush.bf16.msra.mxu0 %v1158
    %1226 = vmatpush.bf16.msra.mxu0 %v1157
    %1227 = vmatpush.bf16.msra.mxu0 %v1156
    %1228 = vmatpush.bf16.msra.mxu0 %v1155
    %1229 = vmatpush.bf16.msra.mxu0 %v1154
    %1230 = vmatpush.bf16.msra.mxu0 %v1153
    %1231 = vmatpush.bf16.msra.mxu0 %v1152
    %1232 = vmatpush.bf16.msra.mxu0 %v1151
    %1233 = vmatmul.bf16.gmra.mxu0 %v937
    %v1234 = vpop.f32.mrf.mxu0
    %v1235 = vadd.f32 %v1222, %v1234
    %v1236 = vpop.f32.mrf.mxu0
    %1237 = vdwg.mxu0
    %1238 = vmatpush.bf16.msra.mxu0 %v1166
    %1239 = vmatpush.bf16.msra.mxu0 %v1165
    %1240 = vmatpush.bf16.msra.mxu0 %v1164
    %1241 = vmatpush.bf16.msra.mxu0 %v1163
    %1242 = vmatpush.bf16.msra.mxu0 %v1162
    %1243 = vmatpush.bf16.msra.mxu0 %v1161
    %1244 = vmatpush.bf16.msra.mxu0 %v1160
    %1245 = vmatpush.bf16.msra.mxu0 %v1159
    %1246 = vmatmul.bf16.gmra.mxu0 %v938
    %v1247 = vpop.f32.mrf.mxu0
    %v1248 = vadd.f32 %v1235, %v1247
    %v1249 = vpop.f32.mrf.mxu0
    %1250 = vdwg.mxu0
    %v1251 = vmul.f32 %v1248, %v1248
    %1253 = vrot.lane.b32.xlu0 %v1251, 120
    %v1254 = vpop.permute.xlu0 %1253
    %v1256 = vadd.f32 %v1251, %v1254
    %1257 = vrot.lane.b32.xlu0 %v1251, 112
    %v1258 = vpop.permute.xlu0 %1257
    %v1260 = vadd.f32 %v1256, %v1258
    %v1261 = vmax.f32 %v1260, 1e-24
    %v1262 = vrsqrt.pop %v1261
    %v1263 = vmul.f32 %v1262, %v1261
    %v1264 = vmul.f32 %v1263, %v1262
    %v1265 = vmul.f32 0.5, %v1264
    %v1266 = vsub.f32 1.5, %v1265
    %v1267 = vmul.f32 %v1262, %v1266
    %vm1268 = vweird.f32 %v1261
    %vm1269 = vweird.f32 %v1262
    %vm1270 = vmor %vm1268, %vm1269
    %v1271 = vsel %vm1270, %v1262, %v1267
    %v1272 = vmul.f32 %v1248, %v1271
    %1274 = vrot.lane.b32.xlu0 %v1271, 8
    %v1275 = vpop.permute.xlu0 %1274
    %v1277 = vmul.f32 %v1248, %v1275
    %1278 = vrot.lane.b32.xlu0 %v1271, 16
    %v1279 = vpop.permute.xlu0 %1278
    %v1281 = vmul.f32 %v1248, %v1279
    %1283 = vrot.lane.b32.xlu0 %v1248, 124
    %v1284 = vpop.permute.xlu0 %1283
    %v1286 = vmul.f32 %v1272, %v1284
    %v1287 = vmul.f32 %v1277, %v1284
    %1289 = vrot.lane.b32.xlu0 %v1287, 120
    %v1290 = vpop.permute.xlu0 %1289
    %v1292 = vadd.f32 %v1286, %v1290
    %v1293 = vmul.f32 %v1281, %v1284
    %1295 = vrot.lane.b32.xlu0 %v1293, 112
    %v1296 = vpop.permute.xlu0 %1295
    %v1298 = vadd.f32 %v1292, %v1296
    %v1299 = vmul.f32 %v1298, %v1272
    %1301 = vrot.lane.b32.xlu0 %v1299, 4
    %v1302 = vpop.permute.xlu0 %1301
    %v1304 = vsub.f32 %v1248, %v1302
    %1306 = vrot.lane.b32.xlu0 %v1277, 120
    %v1307 = vpop.permute.xlu0 %1306
    %v1309 = vmul.f32 %v1298, %v1307
    %1311 = vrot.lane.b32.xlu0 %v1309, 12
    %v1312 = vpop.permute.xlu0 %1311
    %v1314 = vsub.f32 %v1248, %v1312
    %1316 = vrot.lane.b32.xlu0 %v1281, 112
    %v1317 = vpop.permute.xlu0 %1316
    %v1319 = vmul.f32 %v1298, %v1317
    %1321 = vrot.lane.b32.xlu0 %v1319, 20
    %v1322 = vpop.permute.xlu0 %1321
    %v1324 = vsub.f32 %v1248, %v1322
    %v1325 = vmul.f32 %v1304, %v1304
    %v1326 = vmul.f32 %v1314, %v1314
    %1328 = vrot.lane.b32.xlu0 %v1326, 120
    %v1329 = vpop.permute.xlu0 %1328
    %v1331 = vadd.f32 %v1325, %v1329
    %v1332 = vmul.f32 %v1324, %v1324
    %1334 = vrot.lane.b32.xlu0 %v1332, 112
    %v1335 = vpop.permute.xlu0 %1334
    %v1337 = vadd.f32 %v1331, %v1335
    %v1338 = vmax.f32 %v1337, 1e-24
    %v1339 = vrsqrt.pop %v1338
    %v1340 = vmul.f32 %v1339, %v1338
    %v1341 = vmul.f32 %v1340, %v1339
    %v1342 = vmul.f32 0.5, %v1341
    %v1343 = vsub.f32 1.5, %v1342
    %v1344 = vmul.f32 %v1339, %v1343
    %vm1345 = vweird.f32 %v1338
    %vm1346 = vweird.f32 %v1339
    %vm1347 = vmor %vm1345, %vm1346
    %v1348 = vsel %vm1347, %v1339, %v1344
    %v1349 = vmul.f32 %v1304, %v1348
    %1351 = vrot.lane.b32.xlu0 %v1348, 8
    %v1352 = vpop.permute.xlu0 %1351
    %v1354 = vmul.f32 %v1314, %v1352
    %1355 = vrot.lane.b32.xlu0 %v1348, 16
    %v1356 = vpop.permute.xlu0 %1355
    %v1358 = vmul.f32 %v1324, %v1356
    %1360 = vrot.lane.b32.xlu0 %v1358, 116
    %v1361 = vpop.permute.xlu0 %1360
    %v1363 = vmul.f32 %v1277, %v1361
    %1365 = vrot.lane.b32.xlu0 %v1354, 4
    %v1366 = vpop.permute.xlu0 %1365
    %v1368 = vmul.f32 %v1281, %v1366
    %1370 = vrot.lane.b32.xlu0 %v1368, 120
    %v1371 = vpop.permute.xlu0 %1370
    %v1373 = vsub.f32 %v1363, %v1371
    %1375 = vrot.lane.b32.xlu0 %v1349, 12
    %v1376 = vpop.permute.xlu0 %1375
    %v1378 = vmul.f32 %v1281, %v1376
    %1379 = vrot.lane.b32.xlu0 %v1358, 108
    %v1380 = vpop.permute.xlu0 %1379
    %v1382 = vmul.f32 %v1272, %v1380
    %1384 = vrot.lane.b32.xlu0 %v1382, 16
    %v1385 = vpop.permute.xlu0 %1384
    %v1387 = vsub.f32 %v1378, %v1385
    %1388 = vrot.lane.b32.xlu0 %v1354, 116
    %v1389 = vpop.permute.xlu0 %1388
    %v1391 = vmul.f32 %v1272, %v1389
    %1392 = vrot.lane.b32.xlu0 %v1349, 4
    %v1393 = vpop.permute.xlu0 %1392
    %v1395 = vmul.f32 %v1277, %v1393
    %1397 = vrot.lane.b32.xlu0 %v1395, 120
    %v1398 = vpop.permute.xlu0 %1397
    %v1400 = vsub.f32 %v1391, %v1398
    %1401 = vrot.lane.b32.xlu0 %v1277, 4
    %v1402 = vpop.permute.xlu0 %1401
    %1405 = vrot.lane.b32.xlu0 %v1387, 4
    %v1406 = vpop.permute.xlu0 %1405
    %1408 = vrot.lane.b32.xlu0 %v1281, 8
    %v1409 = vpop.permute.xlu0 %1408
    %1411 = vrot.lane.b32.xlu0 %v1358, 8
    %v1412 = vpop.permute.xlu0 %1411
    %1415 = vrot.lane.b32.xlu0 %v1400, 32
    %v1416 = vpop.permute.xlu0 %1415
    %vm1418 = vcmask 31744
    %v1419 = vsel %vm1418, %v1272, %v1349
    %vm1420 = vcmask 64512
    %v1421 = vsel %vm1420, %v1419, %v1373
    %vm1422 = vcmask 97280
    %v1423 = vsel %vm1422, %v1421, %v1402
    %vm1424 = vcmask 130048
    %v1425 = vsel %vm1424, %v1423, %v1366
    %vm1426 = vcmask 162816
    %v1427 = vsel %vm1426, %v1425, %v1406
    %vm1428 = vcmask 195584
    %v1429 = vsel %vm1428, %v1427, %v1409
    %vm1430 = vcmask 228352
    %v1431 = vsel %vm1430, %v1429, %v1412
    %vm1432 = vcmask 261120
    %v1433 = vsel %vm1432, %v1431, %v1416
    %v1434 = vld [vmem:[%s17] sm:$0xff]
    %v1435 = vld [vmem:[%s17 + $0x8] sm:$0xff]
    %v1436 = vld [vmem:[%s17 + $0x10] sm:$0xff]
    %v1437 = vld [vmem:[%s17 + $0x18] sm:$0xff]
    %v1438 = vld [vmem:[%s17 + $0x20] sm:$0xf]
    %vm1439 = vcmask 293888
    %v1441 = vsel %vm1439, %v1433, 0
    %vm1443 = vcmask 1043456
    %v1445 = vsel %vm1443, %v1438, 0
    %1447 = vmatpush.msra.mxu0 0.0
    %1448 = vmatpush.msra.mxu0 0.0
    %1449 = vmatpush.msra.mxu0 0.0
    %1450 = vmatpush.msra.mxu0 0.0
    %1451 = vmatpush.msra.mxu0 0.0
    %1452 = vmatpush.msra.mxu0 0.0
    %1453 = vmatpush.msra.mxu0 0.0
    %1454 = vmatpush.msra.mxu0 0.0
    %1455 = vmatpush.msra.mxu0 0.0
    %1456 = vmatpush.msra.mxu0 0.0
    %1457 = vmatpush.msra.mxu0 0.0
    %1458 = vmatpush.msra.mxu0 %v1445
    %1459 = vmatpush.msra.mxu0 %v1437
    %1460 = vmatpush.msra.mxu0 %v1436
    %1461 = vmatpush.msra.mxu0 %v1435
    %1462 = vmatpush.msra.mxu0 %v1434
    %1463 = vmatmul.f32.gmra.mxu0 %v1441
    %v1464 = vpop.f32.mrf.mxu0
    %v1465 = vadd.f32 0.0, %v1464
    %1466 = vdwg.mxu0
    %vm1467 = vcmask 287744
    %1468 = vst.msk [vmem:[%s18] sm:$0x3] %vm1467, %v1465
    %v1469 = vtanh.pop %v1248
    %1471 = vrot.lane.b32.xlu0 %v1469, 104
    %v1472 = vpop.permute.xlu0 %1471
    %vm1474 = vcmask 91136
    %1475 = vst.msk [vmem:[%s19] sm:$0x3] %vm1474, %v1472
    %v1476 = vxor.u32 %v1248, 2147483648
    %v1477 = vmul.f32 %v1476, 1.442695
    %v1478 = vpow.pop %v1477
    %v1479 = vadd.f32 %v1478, 1.0
    %v1480 = vrcp.pop %v1479
    %v1481 = vmul.f32 %v1479, %v1480
    %v1482 = vsub.f32 1.0, %v1481
    %v1483 = vmul.f32 %v1480, %v1482
    %v1484 = vadd.f32 %v1480, %v1483
    %vm1485 = vweird.f32 %v1479
    %vm1486 = vweird.f32 %v1480
    %vm1487 = vmor %vm1485, %vm1486
    %v1488 = vsel %vm1487, %v1480, %v1484
    %v1489 = vand.u32 2147483647, %v1479
    %vm1490 = vcmp.eq.f32.partialorder %v1489, 8.507059e+37
    %v1491 = vand.u32 %v1479, 2147483648
    %v1492 = vor.u32 1.1754944e-38, %v1491
    %v1493 = vsel %vm1490, %v1492, %v1488
    %v1494 = vmul.f32 1.0, %v1493
    %v1495 = vmul.f32 %v1494, 0.5
    %v1496 = vadd.f32 %v1495, 0.1
    %1498 = vrot.lane.b32.xlu0 %v1496, 92
    %v1499 = vpop.permute.xlu0 %1498
    %1501 = vst.msk [vmem:[%s20] sm:$0x3] %vm1474, %v1499
    %v1502 = vld [vmem:[#allocation10] sm:$0xf]
    %v1503 = vld [vmem:[#allocation10 + $0x4] sm:$0xf]
    %v1504 = vld [vmem:[#allocation10 + $0x8] sm:$0xf]
    %v1505 = vld [vmem:[#allocation10 + $0xc] sm:$0xf]
    %v1506 = vld [vmem:[#allocation10 + $0x10] sm:$0xf]
    %v1507 = vld [vmem:[#allocation10 + $0x14] sm:$0xf]
    %v1508 = vld [vmem:[#allocation10 + $0x18] sm:$0xf]
    %v1509 = vld [vmem:[#allocation10 + $0x1c] sm:$0xf]
    %v1510 = vld [vmem:[#allocation12] sm:$0x1]
    %v1512 = vperm.slane %v1510, 0
    %1515 = vrot.lane.b32.xlu0 %v238, 64
    %v1516 = vpop.permute.xlu0 %1515
    %v1525 = vunpack.c.l.b16 %v1502
    %v1526 = vunpack.c.l.b16 %v1503
    %v1527 = vunpack.c.l.b16 %v1504
    %v1528 = vunpack.c.l.b16 %v1505
    %v1529 = vunpack.c.l.b16 %v1506
    %v1530 = vunpack.c.l.b16 %v1507
    %v1531 = vunpack.c.l.b16 %v1508
    %v1532 = vunpack.c.l.b16 %v1509
    %v1533 = vpack.c.b16 %v1526, %v1525
    %v1534 = vpack.c.b16 %v1528, %v1527
    %v1535 = vpack.c.b16 %v1530, %v1529
    %v1536 = vpack.c.b16 %v1532, %v1531
    %v1542 = vsel %vm275, %v1516, 0
    %1544 = vmatpush.bf16.msra.mxu0 0
    %1545 = vmatpush.bf16.msra.mxu0 0
    %1546 = vmatpush.bf16.msra.mxu0 0
    %1547 = vmatpush.bf16.msra.mxu0 0
    %1548 = vmatpush.bf16.msra.mxu0 %v1536
    %1549 = vmatpush.bf16.msra.mxu0 %v1535
    %1550 = vmatpush.bf16.msra.mxu0 %v1534
    %1551 = vmatpush.bf16.msra.mxu0 %v1533
    %1552 = vmatmul.bf16.gmra.mxu0 %v1542
    %v1553 = vpop.f32.mrf.mxu0
    %v1554 = vadd.f32 %v1512, %v1553
    %v1555 = vpop.f32.mrf.mxu0
    %1556 = vdwg.mxu0
    %v1557 = vmul.f32 %v1554, 0.2
    %v1558 = vmax.f32 %v1554, %v1557
    %v1559 = vpack.c.bf16 %v1558, %v1558
    %v1560 = vld [vmem:[#allocation13] sm:$0xff]
    %v1561 = vld [vmem:[#allocation13 + $0x8] sm:$0xff]
    %v1562 = vld [vmem:[#allocation13 + $0x10] sm:$0xff]
    %v1563 = vld [vmem:[#allocation13 + $0x18] sm:$0xff]
    %v1564 = vld [vmem:[#allocation13 + $0x20] sm:$0xff]
    %v1565 = vld [vmem:[#allocation13 + $0x28] sm:$0xff]
    %v1566 = vld [vmem:[#allocation13 + $0x30] sm:$0xff]
    %v1567 = vld [vmem:[#allocation13 + $0x38] sm:$0xff]
    %v1568 = vld [vmem:[#allocation13 + $0x40] sm:$0xff]
    %v1569 = vld [vmem:[#allocation13 + $0x48] sm:$0xff]
    %v1570 = vld [vmem:[#allocation13 + $0x50] sm:$0xff]
    %v1571 = vld [vmem:[#allocation13 + $0x58] sm:$0xff]
    %v1572 = vld [vmem:[#allocation13 + $0x60] sm:$0xff]
    %v1573 = vld [vmem:[#allocation13 + $0x68] sm:$0xff]
    %v1574 = vld [vmem:[#allocation13 + $0x70] sm:$0xff]
    %v1575 = vld [vmem:[#allocation13 + $0x78] sm:$0xff]
    %v1576 = vld [vmem:[#allocation15] sm:$0x3]
    %v1578 = vperm.slane %v1576, 0
    %v1579 = vperm.slane %v1576, 1
    %v1598 = vunpack.c.l.b16 %v1560
    %v1599 = vunpack.c.h.b16 %v1560
    %v1600 = vunpack.c.l.b16 %v1561
    %v1601 = vunpack.c.h.b16 %v1561
    %v1602 = vunpack.c.l.b16 %v1562
    %v1603 = vunpack.c.h.b16 %v1562
    %v1604 = vunpack.c.l.b16 %v1563
    %v1605 = vunpack.c.h.b16 %v1563
    %v1606 = vunpack.c.l.b16 %v1564
    %v1607 = vunpack.c.h.b16 %v1564
    %v1608 = vunpack.c.l.b16 %v1565
    %v1609 = vunpack.c.h.b16 %v1565
    %v1610 = vunpack.c.l.b16 %v1566
    %v1611 = vunpack.c.h.b16 %v1566
    %v1612 = vunpack.c.l.b16 %v1567
    %v1613 = vunpack.c.h.b16 %v1567
    %v1614 = vunpack.c.l.b16 %v1568
    %v1615 = vunpack.c.h.b16 %v1568
    %v1616 = vunpack.c.l.b16 %v1569
    %v1617 = vunpack.c.h.b16 %v1569
    %v1618 = vunpack.c.l.b16 %v1570
    %v1619 = vunpack.c.h.b16 %v1570
    %v1620 = vunpack.c.l.b16 %v1571
    %v1621 = vunpack.c.h.b16 %v1571
    %v1622 = vunpack.c.l.b16 %v1572
    %v1623 = vunpack.c.h.b16 %v1572
    %v1624 = vunpack.c.l.b16 %v1573
    %v1625 = vunpack.c.h.b16 %v1573
    %v1626 = vunpack.c.l.b16 %v1574
    %v1627 = vunpack.c.h.b16 %v1574
    %v1628 = vunpack.c.l.b16 %v1575
    %v1629 = vunpack.c.h.b16 %v1575
    %v1630 = vpack.c.b16 %v1600, %v1598
    %v1631 = vpack.c.b16 %v1601, %v1599
    %v1632 = vpack.c.b16 %v1604, %v1602
    %v1633 = vpack.c.b16 %v1605, %v1603
    %v1634 = vpack.c.b16 %v1608, %v1606
    %v1635 = vpack.c.b16 %v1609, %v1607
    %v1636 = vpack.c.b16 %v1612, %v1610
    %v1637 = vpack.c.b16 %v1613, %v1611
    %v1638 = vpack.c.b16 %v1616, %v1614
    %v1639 = vpack.c.b16 %v1617, %v1615
    %v1640 = vpack.c.b16 %v1620, %v1618
    %v1641 = vpack.c.b16 %v1621, %v1619
    %v1642 = vpack.c.b16 %v1624, %v1622
    %v1643 = vpack.c.b16 %v1625, %v1623
    %v1644 = vpack.c.b16 %v1628, %v1626
    %v1645 = vpack.c.b16 %v1629, %v1627
    %1662 = vmatpush.bf16.msra.mxu0 %v1644
    %1663 = vmatpush.bf16.msra.mxu0 %v1642
    %1664 = vmatpush.bf16.msra.mxu0 %v1640
    %1665 = vmatpush.bf16.msra.mxu0 %v1638
    %1666 = vmatpush.bf16.msra.mxu0 %v1636
    %1667 = vmatpush.bf16.msra.mxu0 %v1634
    %1668 = vmatpush.bf16.msra.mxu0 %v1632
    %1669 = vmatpush.bf16.msra.mxu0 %v1630
    %1670 = vmatmul.bf16.gmra.mxu0 %v1559
    %v1671 = vpop.f32.mrf.mxu0
    %v1672 = vadd.f32 %v1578, %v1671
    %v1673 = vpop.f32.mrf.mxu0
    %1674 = vdwg.mxu0
    %1675 = vmatpush.bf16.msra.mxu0 %v1645
    %1676 = vmatpush.bf16.msra.mxu0 %v1643
    %1677 = vmatpush.bf16.msra.mxu0 %v1641
    %1678 = vmatpush.bf16.msra.mxu0 %v1639
    %1679 = vmatpush.bf16.msra.mxu0 %v1637
    %1680 = vmatpush.bf16.msra.mxu0 %v1635
    %1681 = vmatpush.bf16.msra.mxu0 %v1633
    %1682 = vmatpush.bf16.msra.mxu0 %v1631
    %1683 = vmatmul.bf16.gmra.mxu0 %v1559
    %v1684 = vpop.f32.mrf.mxu0
    %v1685 = vadd.f32 %v1579, %v1684
    %v1686 = vpop.f32.mrf.mxu0
    %1687 = vdwg.mxu0
    %v1688 = vmul.f32 %v1672, 0.2
    %v1689 = vmul.f32 %v1685, 0.2
    %v1690 = vmax.f32 %v1672, %v1688
    %v1691 = vmax.f32 %v1685, %v1689
    %v1692 = vpack.c.bf16 %v1690, %v1690
    %v1693 = vpack.c.bf16 %v1691, %v1691
    %v1694 = vld [vmem:[#allocation16] sm:$0xff]
    %v1695 = vld [vmem:[#allocation16 + $0x8] sm:$0xff]
    %v1696 = vld [vmem:[#allocation16 + $0x10] sm:$0xff]
    %v1697 = vld [vmem:[#allocation16 + $0x18] sm:$0xff]
    %v1698 = vld [vmem:[#allocation16 + $0x20] sm:$0xff]
    %v1699 = vld [vmem:[#allocation16 + $0x28] sm:$0xff]
    %v1700 = vld [vmem:[#allocation16 + $0x30] sm:$0xff]
    %v1701 = vld [vmem:[#allocation16 + $0x38] sm:$0xff]
    %v1702 = vld [vmem:[#allocation16 + $0x40] sm:$0xff]
    %v1703 = vld [vmem:[#allocation16 + $0x48] sm:$0xff]
    %v1704 = vld [vmem:[#allocation16 + $0x50] sm:$0xff]
    %v1705 = vld [vmem:[#allocation16 + $0x58] sm:$0xff]
    %v1706 = vld [vmem:[#allocation16 + $0x60] sm:$0xff]
    %v1707 = vld [vmem:[#allocation16 + $0x68] sm:$0xff]
    %v1708 = vld [vmem:[#allocation16 + $0x70] sm:$0xff]
    %v1709 = vld [vmem:[#allocation16 + $0x78] sm:$0xff]
    %v1710 = vld [vmem:[#allocation16 + $0x80] sm:$0xff]
    %v1711 = vld [vmem:[#allocation16 + $0x88] sm:$0xff]
    %v1712 = vld [vmem:[#allocation16 + $0x90] sm:$0xff]
    %v1713 = vld [vmem:[#allocation16 + $0x98] sm:$0xff]
    %v1714 = vld [vmem:[#allocation16 + $0xa0] sm:$0xff]
    %v1715 = vld [vmem:[#allocation16 + $0xa8] sm:$0xff]
    %v1716 = vld [vmem:[#allocation16 + $0xb0] sm:$0xff]
    %v1717 = vld [vmem:[#allocation16 + $0xb8] sm:$0xff]
    %v1718 = vld [vmem:[#allocation16 + $0xc0] sm:$0xff]
    %v1719 = vld [vmem:[#allocation16 + $0xc8] sm:$0xff]
    %v1720 = vld [vmem:[#allocation16 + $0xd0] sm:$0xff]
    %v1721 = vld [vmem:[#allocation16 + $0xd8] sm:$0xff]
    %v1722 = vld [vmem:[#allocation16 + $0xe0] sm:$0xff]
    %v1723 = vld [vmem:[#allocation16 + $0xe8] sm:$0xff]
    %v1724 = vld [vmem:[#allocation16 + $0xf0] sm:$0xff]
    %v1725 = vld [vmem:[#allocation16 + $0xf8] sm:$0xff]
    %v1726 = vld [vmem:[#allocation16 + $0x100] sm:$0xff]
    %v1727 = vld [vmem:[#allocation16 + $0x108] sm:$0xff]
    %v1728 = vld [vmem:[#allocation16 + $0x110] sm:$0xff]
    %v1729 = vld [vmem:[#allocation16 + $0x118] sm:$0xff]
    %v1730 = vld [vmem:[#allocation16 + $0x120] sm:$0xff]
    %v1731 = vld [vmem:[#allocation16 + $0x128] sm:$0xff]
    %v1732 = vld [vmem:[#allocation16 + $0x130] sm:$0xff]
    %v1733 = vld [vmem:[#allocation16 + $0x138] sm:$0xff]
    %v1734 = vld [vmem:[#allocation16 + $0x140] sm:$0xff]
    %v1735 = vld [vmem:[#allocation16 + $0x148] sm:$0xff]
    %v1736 = vld [vmem:[#allocation16 + $0x150] sm:$0xff]
    %v1737 = vld [vmem:[#allocation16 + $0x158] sm:$0xff]
    %v1738 = vld [vmem:[#allocation16 + $0x160] sm:$0xff]
    %v1739 = vld [vmem:[#allocation16 + $0x168] sm:$0xff]
    %v1740 = vld [vmem:[#allocation16 + $0x170] sm:$0xff]
    %v1741 = vld [vmem:[#allocation16 + $0x178] sm:$0xff]
    %v1742 = vld [vmem:[#allocation16 + $0x180] sm:$0xff]
    %v1743 = vld [vmem:[#allocation16 + $0x188] sm:$0xff]
    %v1744 = vld [vmem:[#allocation16 + $0x190] sm:$0xff]
    %v1745 = vld [vmem:[#allocation16 + $0x198] sm:$0xff]
    %v1746 = vld [vmem:[#allocation16 + $0x1a0] sm:$0xff]
    %v1747 = vld [vmem:[#allocation16 + $0x1a8] sm:$0xff]
    %v1748 = vld [vmem:[#allocation16 + $0x1b0] sm:$0xff]
    %v1749 = vld [vmem:[#allocation16 + $0x1b8] sm:$0xff]
    %v1750 = vld [vmem:[#allocation16 + $0x1c0] sm:$0xff]
    %v1751 = vld [vmem:[#allocation16 + $0x1c8] sm:$0xff]
    %v1752 = vld [vmem:[#allocation16 + $0x1d0] sm:$0xff]
    %v1753 = vld [vmem:[#allocation16 + $0x1d8] sm:$0xff]
    %v1754 = vld [vmem:[#allocation16 + $0x1e0] sm:$0xff]
    %v1755 = vld [vmem:[#allocation16 + $0x1e8] sm:$0xff]
    %v1756 = vld [vmem:[#allocation16 + $0x1f0] sm:$0xff]
    %v1757 = vld [vmem:[#allocation16 + $0x1f8] sm:$0xff]
    %v1758 = vld [vmem:[#allocation18] sm:$0xf]
    %v1760 = vperm.slane %v1758, 0
    %v1761 = vperm.slane %v1758, 1
    %v1762 = vperm.slane %v1758, 2
    %v1763 = vperm.slane %v1758, 3
    %v1832 = vunpack.c.l.b16 %v1694
    %v1833 = vunpack.c.h.b16 %v1694
    %v1834 = vunpack.c.l.b16 %v1695
    %v1835 = vunpack.c.h.b16 %v1695
    %v1836 = vunpack.c.l.b16 %v1696
    %v1837 = vunpack.c.h.b16 %v1696
    %v1838 = vunpack.c.l.b16 %v1697
    %v1839 = vunpack.c.h.b16 %v1697
    %v1840 = vunpack.c.l.b16 %v1698
    %v1841 = vunpack.c.h.b16 %v1698
    %v1842 = vunpack.c.l.b16 %v1699
    %v1843 = vunpack.c.h.b16 %v1699
    %v1844 = vunpack.c.l.b16 %v1700
    %v1845 = vunpack.c.h.b16 %v1700
    %v1846 = vunpack.c.l.b16 %v1701
    %v1847 = vunpack.c.h.b16 %v1701
    %v1848 = vunpack.c.l.b16 %v1702
    %v1849 = vunpack.c.h.b16 %v1702
    %v1850 = vunpack.c.l.b16 %v1703
    %v1851 = vunpack.c.h.b16 %v1703
    %v1852 = vunpack.c.l.b16 %v1704
    %v1853 = vunpack.c.h.b16 %v1704
    %v1854 = vunpack.c.l.b16 %v1705
    %v1855 = vunpack.c.h.b16 %v1705
    %v1856 = vunpack.c.l.b16 %v1706
    %v1857 = vunpack.c.h.b16 %v1706
    %v1858 = vunpack.c.l.b16 %v1707
    %v1859 = vunpack.c.h.b16 %v1707
    %v1860 = vunpack.c.l.b16 %v1708
    %v1861 = vunpack.c.h.b16 %v1708
    %v1862 = vunpack.c.l.b16 %v1709
    %v1863 = vunpack.c.h.b16 %v1709
    %v1864 = vunpack.c.l.b16 %v1710
    %v1865 = vunpack.c.h.b16 %v1710
    %v1866 = vunpack.c.l.b16 %v1711
    %v1867 = vunpack.c.h.b16 %v1711
    %v1868 = vunpack.c.l.b16 %v1712
    %v1869 = vunpack.c.h.b16 %v1712
    %v1870 = vunpack.c.l.b16 %v1713
    %v1871 = vunpack.c.h.b16 %v1713
    %v1872 = vunpack.c.l.b16 %v1714
    %v1873 = vunpack.c.h.b16 %v1714
    %v1874 = vunpack.c.l.b16 %v1715
    %v1875 = vunpack.c.h.b16 %v1715
    %v1876 = vunpack.c.l.b16 %v1716
    %v1877 = vunpack.c.h.b16 %v1716
    %v1878 = vunpack.c.l.b16 %v1717
    %v1879 = vunpack.c.h.b16 %v1717
    %v1880 = vunpack.c.l.b16 %v1718
    %v1881 = vunpack.c.h.b16 %v1718
    %v1882 = vunpack.c.l.b16 %v1719
    %v1883 = vunpack.c.h.b16 %v1719
    %v1884 = vunpack.c.l.b16 %v1720
    %v1885 = vunpack.c.h.b16 %v1720
    %v1886 = vunpack.c.l.b16 %v1721
    %v1887 = vunpack.c.h.b16 %v1721
    %v1888 = vunpack.c.l.b16 %v1722
    %v1889 = vunpack.c.h.b16 %v1722
    %v1890 = vunpack.c.l.b16 %v1723
    %v1891 = vunpack.c.h.b16 %v1723
    %v1892 = vunpack.c.l.b16 %v1724
    %v1893 = vunpack.c.h.b16 %v1724
    %v1894 = vunpack.c.l.b16 %v1725
    %v1895 = vunpack.c.h.b16 %v1725
    %v1896 = vunpack.c.l.b16 %v1726
    %v1897 = vunpack.c.h.b16 %v1726
    %v1898 = vunpack.c.l.b16 %v1727
    %v1899 = vunpack.c.h.b16 %v1727
    %v1900 = vunpack.c.l.b16 %v1728
    %v1901 = vunpack.c.h.b16 %v1728
    %v1902 = vunpack.c.l.b16 %v1729
    %v1903 = vunpack.c.h.b16 %v1729
    %v1904 = vunpack.c.l.b16 %v1730
    %v1905 = vunpack.c.h.b16 %v1730
    %v1906 = vunpack.c.l.b16 %v1731
    %v1907 = vunpack.c.h.b16 %v1731
    %v1908 = vunpack.c.l.b16 %v1732
    %v1909 = vunpack.c.h.b16 %v1732
    %v1910 = vunpack.c.l.b16 %v1733
    %v1911 = vunpack.c.h.b16 %v1733
    %v1912 = vunpack.c.l.b16 %v1734
    %v1913 = vunpack.c.h.b16 %v1734
    %v1914 = vunpack.c.l.b16 %v1735
    %v1915 = vunpack.c.h.b16 %v1735
    %v1916 = vunpack.c.l.b16 %v1736
    %v1917 = vunpack.c.h.b16 %v1736
    %v1918 = vunpack.c.l.b16 %v1737
    %v1919 = vunpack.c.h.b16 %v1737
    %v1920 = vunpack.c.l.b16 %v1738
    %v1921 = vunpack.c.h.b16 %v1738
    %v1922 = vunpack.c.l.b16 %v1739
    %v1923 = vunpack.c.h.b16 %v1739
    %v1924 = vunpack.c.l.b16 %v1740
    %v1925 = vunpack.c.h.b16 %v1740
    %v1926 = vunpack.c.l.b16 %v1741
    %v1927 = vunpack.c.h.b16 %v1741
    %v1928 = vunpack.c.l.b16 %v1742
    %v1929 = vunpack.c.h.b16 %v1742
    %v1930 = vunpack.c.l.b16 %v1743
    %v1931 = vunpack.c.h.b16 %v1743
    %v1932 = vunpack.c.l.b16 %v1744
    %v1933 = vunpack.c.h.b16 %v1744
    %v1934 = vunpack.c.l.b16 %v1745
    %v1935 = vunpack.c.h.b16 %v1745
    %v1936 = vunpack.c.l.b16 %v1746
    %v1937 = vunpack.c.h.b16 %v1746
    %v1938 = vunpack.c.l.b16 %v1747
    %v1939 = vunpack.c.h.b16 %v1747
    %v1940 = vunpack.c.l.b16 %v1748
    %v1941 = vunpack.c.h.b16 %v1748
    %v1942 = vunpack.c.l.b16 %v1749
    %v1943 = vunpack.c.h.b16 %v1749
    %v1944 = vunpack.c.l.b16 %v1750
    %v1945 = vunpack.c.h.b16 %v1750
    %v1946 = vunpack.c.l.b16 %v1751
    %v1947 = vunpack.c.h.b16 %v1751
    %v1948 = vunpack.c.l.b16 %v1752
    %v1949 = vunpack.c.h.b16 %v1752
    %v1950 = vunpack.c.l.b16 %v1753
    %v1951 = vunpack.c.h.b16 %v1753
    %v1952 = vunpack.c.l.b16 %v1754
    %v1953 = vunpack.c.h.b16 %v1754
    %v1954 = vunpack.c.l.b16 %v1755
    %v1955 = vunpack.c.h.b16 %v1755
    %v1956 = vunpack.c.l.b16 %v1756
    %v1957 = vunpack.c.h.b16 %v1756
    %v1958 = vunpack.c.l.b16 %v1757
    %v1959 = vunpack.c.h.b16 %v1757
    %v1960 = vpack.c.b16 %v1836, %v1832
    %v1961 = vpack.c.b16 %v1837, %v1833
    %v1962 = vpack.c.b16 %v1838, %v1834
    %v1963 = vpack.c.b16 %v1839, %v1835
    %v1964 = vpack.c.b16 %v1844, %v1840
    %v1965 = vpack.c.b16 %v1845, %v1841
    %v1966 = vpack.c.b16 %v1846, %v1842
    %v1967 = vpack.c.b16 %v1847, %v1843
    %v1968 = vpack.c.b16 %v1852, %v1848
    %v1969 = vpack.c.b16 %v1853, %v1849
    %v1970 = vpack.c.b16 %v1854, %v1850
    %v1971 = vpack.c.b16 %v1855, %v1851
    %v1972 = vpack.c.b16 %v1860, %v1856
    %v1973 = vpack.c.b16 %v1861, %v1857
    %v1974 = vpack.c.b16 %v1862, %v1858
    %v1975 = vpack.c.b16 %v1863, %v1859
    %v1976 = vpack.c.b16 %v1868, %v1864
    %v1977 = vpack.c.b16 %v1869, %v1865
    %v1978 = vpack.c.b16 %v1870, %v1866
    %v1979 = vpack.c.b16 %v1871, %v1867
    %v1980 = vpack.c.b16 %v1876, %v1872
    %v1981 = vpack.c.b16 %v1877, %v1873
    %v1982 = vpack.c.b16 %v1878, %v1874
    %v1983 = vpack.c.b16 %v1879, %v1875
    %v1984 = vpack.c.b16 %v1884, %v1880
    %v1985 = vpack.c.b16 %v1885, %v1881
    %v1986 = vpack.c.b16 %v1886, %v1882
    %v1987 = vpack.c.b16 %v1887, %v1883
    %v1988 = vpack.c.b16 %v1892, %v1888
    %v1989 = vpack.c.b16 %v1893, %v1889
    %v1990 = vpack.c.b16 %v1894, %v1890
    %v1991 = vpack.c.b16 %v1895, %v1891
    %v1992 = vpack.c.b16 %v1900, %v1896
    %v1993 = vpack.c.b16 %v1901, %v1897
    %v1994 = vpack.c.b16 %v1902, %v1898
    %v1995 = vpack.c.b16 %v1903, %v1899
    %v1996 = vpack.c.b16 %v1908, %v1904
    %v1997 = vpack.c.b16 %v1909, %v1905
    %v1998 = vpack.c.b16 %v1910, %v1906
    %v1999 = vpack.c.b16 %v1911, %v1907
    %v2000 = vpack.c.b16 %v1916, %v1912
    %v2001 = vpack.c.b16 %v1917, %v1913
    %v2002 = vpack.c.b16 %v1918, %v1914
    %v2003 = vpack.c.b16 %v1919, %v1915
    %v2004 = vpack.c.b16 %v1924, %v1920
    %v2005 = vpack.c.b16 %v1925, %v1921
    %v2006 = vpack.c.b16 %v1926, %v1922
    %v2007 = vpack.c.b16 %v1927, %v1923
    %v2008 = vpack.c.b16 %v1932, %v1928
    %v2009 = vpack.c.b16 %v1933, %v1929
    %v2010 = vpack.c.b16 %v1934, %v1930
    %v2011 = vpack.c.b16 %v1935, %v1931
    %v2012 = vpack.c.b16 %v1940, %v1936
    %v2013 = vpack.c.b16 %v1941, %v1937
    %v2014 = vpack.c.b16 %v1942, %v1938
    %v2015 = vpack.c.b16 %v1943, %v1939
    %v2016 = vpack.c.b16 %v1948, %v1944
    %v2017 = vpack.c.b16 %v1949, %v1945
    %v2018 = vpack.c.b16 %v1950, %v1946
    %v2019 = vpack.c.b16 %v1951, %v1947
    %v2020 = vpack.c.b16 %v1956, %v1952
    %v2021 = vpack.c.b16 %v1957, %v1953
    %v2022 = vpack.c.b16 %v1958, %v1954
    %v2023 = vpack.c.b16 %v1959, %v1955
    %2088 = vmatpush.bf16.msra.mxu0 %v1988
    %2089 = vmatpush.bf16.msra.mxu0 %v1984
    %2090 = vmatpush.bf16.msra.mxu0 %v1980
    %2091 = vmatpush.bf16.msra.mxu0 %v1976
    %2092 = vmatpush.bf16.msra.mxu0 %v1972
    %2093 = vmatpush.bf16.msra.mxu0 %v1968
    %2094 = vmatpush.bf16.msra.mxu0 %v1964
    %2095 = vmatpush.bf16.msra.mxu0 %v1960
    %2096 = vmatmul.bf16.gmra.mxu0 %v1692
    %v2097 = vpop.f32.mrf.mxu0
    %v2098 = vadd.f32 %v1760, %v2097
    %v2099 = vpop.f32.mrf.mxu0
    %2100 = vdwg.mxu0
    %2101 = vmatpush.bf16.msra.mxu0 %v2020
    %2102 = vmatpush.bf16.msra.mxu0 %v2016
    %2103 = vmatpush.bf16.msra.mxu0 %v2012
    %2104 = vmatpush.bf16.msra.mxu0 %v2008
    %2105 = vmatpush.bf16.msra.mxu0 %v2004
    %2106 = vmatpush.bf16.msra.mxu0 %v2000
    %2107 = vmatpush.bf16.msra.mxu0 %v1996
    %2108 = vmatpush.bf16.msra.mxu0 %v1992
    %2109 = vmatmul.bf16.gmra.mxu0 %v1693
    %v2110 = vpop.f32.mrf.mxu0
    %v2111 = vadd.f32 %v2098, %v2110
    %v2112 = vpop.f32.mrf.mxu0
    %2113 = vdwg.mxu0
    %2114 = vmatpush.bf16.msra.mxu0 %v1989
    %2115 = vmatpush.bf16.msra.mxu0 %v1985
    %2116 = vmatpush.bf16.msra.mxu0 %v1981
    %2117 = vmatpush.bf16.msra.mxu0 %v1977
    %2118 = vmatpush.bf16.msra.mxu0 %v1973
    %2119 = vmatpush.bf16.msra.mxu0 %v1969
    %2120 = vmatpush.bf16.msra.mxu0 %v1965
    %2121 = vmatpush.bf16.msra.mxu0 %v1961
    %2122 = vmatmul.bf16.gmra.mxu0 %v1692
    %v2123 = vpop.f32.mrf.mxu0
    %v2124 = vadd.f32 %v1761, %v2123
    %v2125 = vpop.f32.mrf.mxu0
    %2126 = vdwg.mxu0
    %2127 = vmatpush.bf16.msra.mxu0 %v2021
    %2128 = vmatpush.bf16.msra.mxu0 %v2017
    %2129 = vmatpush.bf16.msra.mxu0 %v2013
    %2130 = vmatpush.bf16.msra.mxu0 %v2009
    %2131 = vmatpush.bf16.msra.mxu0 %v2005
    %2132 = vmatpush.bf16.msra.mxu0 %v2001
    %2133 = vmatpush.bf16.msra.mxu0 %v1997
    %2134 = vmatpush.bf16.msra.mxu0 %v1993
    %2135 = vmatmul.bf16.gmra.mxu0 %v1693
    %v2136 = vpop.f32.mrf.mxu0
    %v2137 = vadd.f32 %v2124, %v2136
    %v2138 = vpop.f32.mrf.mxu0
    %2139 = vdwg.mxu0
    %2140 = vmatpush.bf16.msra.mxu0 %v1990
    %2141 = vmatpush.bf16.msra.mxu0 %v1986
    %2142 = vmatpush.bf16.msra.mxu0 %v1982
    %2143 = vmatpush.bf16.msra.mxu0 %v1978
    %2144 = vmatpush.bf16.msra.mxu0 %v1974
    %2145 = vmatpush.bf16.msra.mxu0 %v1970
    %2146 = vmatpush.bf16.msra.mxu0 %v1966
    %2147 = vmatpush.bf16.msra.mxu0 %v1962
    %2148 = vmatmul.bf16.gmra.mxu0 %v1692
    %v2149 = vpop.f32.mrf.mxu0
    %v2150 = vadd.f32 %v1762, %v2149
    %v2151 = vpop.f32.mrf.mxu0
    %2152 = vdwg.mxu0
    %2153 = vmatpush.bf16.msra.mxu0 %v2022
    %2154 = vmatpush.bf16.msra.mxu0 %v2018
    %2155 = vmatpush.bf16.msra.mxu0 %v2014
    %2156 = vmatpush.bf16.msra.mxu0 %v2010
    %2157 = vmatpush.bf16.msra.mxu0 %v2006
    %2158 = vmatpush.bf16.msra.mxu0 %v2002
    %2159 = vmatpush.bf16.msra.mxu0 %v1998
    %2160 = vmatpush.bf16.msra.mxu0 %v1994
    %2161 = vmatmul.bf16.gmra.mxu0 %v1693
    %v2162 = vpop.f32.mrf.mxu0
    %v2163 = vadd.f32 %v2150, %v2162
    %v2164 = vpop.f32.mrf.mxu0
    %2165 = vdwg.mxu0
    %2166 = vmatpush.bf16.msra.mxu0 %v1991
    %2167 = vmatpush.bf16.msra.mxu0 %v1987
    %2168 = vmatpush.bf16.msra.mxu0 %v1983
    %2169 = vmatpush.bf16.msra.mxu0 %v1979
    %2170 = vmatpush.bf16.msra.mxu0 %v1975
    %2171 = vmatpush.bf16.msra.mxu0 %v1971
    %2172 = vmatpush.bf16.msra.mxu0 %v1967
    %2173 = vmatpush.bf16.msra.mxu0 %v1963
    %2174 = vmatmul.bf16.gmra.mxu0 %v1692
    %v2175 = vpop.f32.mrf.mxu0
    %v2176 = vadd.f32 %v1763, %v2175
    %v2177 = vpop.f32.mrf.mxu0
    %2178 = vdwg.mxu0
    %2179 = vmatpush.bf16.msra.mxu0 %v2023
    %2180 = vmatpush.bf16.msra.mxu0 %v2019
    %2181 = vmatpush.bf16.msra.mxu0 %v2015
    %2182 = vmatpush.bf16.msra.mxu0 %v2011
    %2183 = vmatpush.bf16.msra.mxu0 %v2007
    %2184 = vmatpush.bf16.msra.mxu0 %v2003
    %2185 = vmatpush.bf16.msra.mxu0 %v1999
    %2186 = vmatpush.bf16.msra.mxu0 %v1995
    %2187 = vmatmul.bf16.gmra.mxu0 %v1693
    %v2188 = vpop.f32.mrf.mxu0
    %v2189 = vadd.f32 %v2176, %v2188
    %v2190 = vpop.f32.mrf.mxu0
    %2191 = vdwg.mxu0
    %v2192 = vmul.f32 %v2111, 0.2
    %v2193 = vmul.f32 %v2137, 0.2
    %v2194 = vmul.f32 %v2163, 0.2
    %v2195 = vmul.f32 %v2189, 0.2
    %v2196 = vmax.f32 %v2111, %v2192
    %v2197 = vmax.f32 %v2137, %v2193
    %v2198 = vmax.f32 %v2163, %v2194
    %v2199 = vmax.f32 %v2189, %v2195
    %v2200 = vpack.c.bf16 %v2196, %v2196
    %v2201 = vpack.c.bf16 %v2197, %v2197
    %v2202 = vpack.c.bf16 %v2198, %v2198
    %v2203 = vpack.c.bf16 %v2199, %v2199
    %v2204 = vld [vmem:[%s15] sm:$0xf]
    %v2205 = vld [vmem:[%s15 + $0x4] sm:$0xf]
    %v2206 = vld [vmem:[%s15 + $0x8] sm:$0xf]
    %v2207 = vld [vmem:[%s15 + $0xc] sm:$0xf]
    %v2208 = vld [vmem:[%s15 + $0x10] sm:$0xf]
    %v2209 = vld [vmem:[%s15 + $0x14] sm:$0xf]
    %v2210 = vld [vmem:[%s15 + $0x18] sm:$0xf]
    %v2211 = vld [vmem:[%s15 + $0x1c] sm:$0xf]
    %v2212 = vld [vmem:[%s15 + $0x20] sm:$0xf]
    %v2213 = vld [vmem:[%s15 + $0x24] sm:$0xf]
    %v2214 = vld [vmem:[%s15 + $0x28] sm:$0xf]
    %v2215 = vld [vmem:[%s15 + $0x2c] sm:$0xf]
    %v2216 = vld [vmem:[%s15 + $0x30] sm:$0xf]
    %v2217 = vld [vmem:[%s15 + $0x34] sm:$0xf]
    %v2218 = vld [vmem:[%s15 + $0x38] sm:$0xf]
    %v2219 = vld [vmem:[%s15 + $0x3c] sm:$0xf]
    %v2220 = vld [vmem:[%s15 + $0x40] sm:$0xf]
    %v2221 = vld [vmem:[%s15 + $0x44] sm:$0xf]
    %v2222 = vld [vmem:[%s15 + $0x48] sm:$0xf]
    %v2223 = vld [vmem:[%s15 + $0x4c] sm:$0xf]
    %v2224 = vld [vmem:[%s15 + $0x50] sm:$0xf]
    %v2225 = vld [vmem:[%s15 + $0x54] sm:$0xf]
    %v2226 = vld [vmem:[%s15 + $0x58] sm:$0xf]
    %v2227 = vld [vmem:[%s15 + $0x5c] sm:$0xf]
    %v2228 = vld [vmem:[%s15 + $0x60] sm:$0xf]
    %v2229 = vld [vmem:[%s15 + $0x64] sm:$0xf]
    %v2230 = vld [vmem:[%s15 + $0x68] sm:$0xf]
    %v2231 = vld [vmem:[%s15 + $0x6c] sm:$0xf]
    %v2232 = vld [vmem:[%s15 + $0x70] sm:$0xf]
    %v2233 = vld [vmem:[%s15 + $0x74] sm:$0xf]
    %v2234 = vld [vmem:[%s15 + $0x78] sm:$0xf]
    %v2235 = vld [vmem:[%s15 + $0x7c] sm:$0xf]
    %v2236 = vld [vmem:[%s15 + $0x80] sm:$0xf]
    %v2237 = vld [vmem:[%s15 + $0x84] sm:$0xf]
    %v2238 = vld [vmem:[%s15 + $0x88] sm:$0xf]
    %v2239 = vld [vmem:[%s15 + $0x8c] sm:$0xf]
    %v2240 = vld [vmem:[%s15 + $0x90] sm:$0xf]
    %v2241 = vld [vmem:[%s15 + $0x94] sm:$0xf]
    %v2242 = vld [vmem:[%s15 + $0x98] sm:$0xf]
    %v2243 = vld [vmem:[%s15 + $0x9c] sm:$0xf]
    %v2244 = vld [vmem:[%s15 + $0xa0] sm:$0xf]
    %v2245 = vld [vmem:[%s15 + $0xa4] sm:$0xf]
    %v2246 = vld [vmem:[%s15 + $0xa8] sm:$0xf]
    %v2247 = vld [vmem:[%s15 + $0xac] sm:$0xf]
    %v2248 = vld [vmem:[%s15 + $0xb0] sm:$0xf]
    %v2249 = vld [vmem:[%s15 + $0xb4] sm:$0xf]
    %v2250 = vld [vmem:[%s15 + $0xb8] sm:$0xf]
    %v2251 = vld [vmem:[%s15 + $0xbc] sm:$0xf]
    %v2252 = vld [vmem:[%s15 + $0xc0] sm:$0xf]
    %v2253 = vld [vmem:[%s15 + $0xc4] sm:$0xf]
    %v2254 = vld [vmem:[%s15 + $0xc8] sm:$0xf]
    %v2255 = vld [vmem:[%s15 + $0xcc] sm:$0xf]
    %v2256 = vld [vmem:[%s15 + $0xd0] sm:$0xf]
    %v2257 = vld [vmem:[%s15 + $0xd4] sm:$0xf]
    %v2258 = vld [vmem:[%s15 + $0xd8] sm:$0xf]
    %v2259 = vld [vmem:[%s15 + $0xdc] sm:$0xf]
    %v2260 = vld [vmem:[%s15 + $0xe0] sm:$0xf]
    %v2261 = vld [vmem:[%s15 + $0xe4] sm:$0xf]
    %v2262 = vld [vmem:[%s15 + $0xe8] sm:$0xf]
    %v2263 = vld [vmem:[%s15 + $0xec] sm:$0xf]
    %v2264 = vld [vmem:[%s15 + $0xf0] sm:$0xf]
    %v2265 = vld [vmem:[%s15 + $0xf4] sm:$0xf]
    %v2266 = vld [vmem:[%s15 + $0xf8] sm:$0xf]
    %v2267 = vld [vmem:[%s15 + $0xfc] sm:$0xf]
    %v2268 = vld [vmem:[#allocation19] sm:$0x1]
    %v2270 = vperm.slane %v2268, 0
    %v2336 = vunpack.c.l.b16 %v2204
    %v2337 = vunpack.c.l.b16 %v2205
    %v2338 = vunpack.c.l.b16 %v2206
    %v2339 = vunpack.c.l.b16 %v2207
    %v2340 = vunpack.c.l.b16 %v2208
    %v2341 = vunpack.c.l.b16 %v2209
    %v2342 = vunpack.c.l.b16 %v2210
    %v2343 = vunpack.c.l.b16 %v2211
    %v2344 = vunpack.c.l.b16 %v2212
    %v2345 = vunpack.c.l.b16 %v2213
    %v2346 = vunpack.c.l.b16 %v2214
    %v2347 = vunpack.c.l.b16 %v2215
    %v2348 = vunpack.c.l.b16 %v2216
    %v2349 = vunpack.c.l.b16 %v2217
    %v2350 = vunpack.c.l.b16 %v2218
    %v2351 = vunpack.c.l.b16 %v2219
    %v2352 = vunpack.c.l.b16 %v2220
    %v2353 = vunpack.c.l.b16 %v2221
    %v2354 = vunpack.c.l.b16 %v2222
    %v2355 = vunpack.c.l.b16 %v2223
    %v2356 = vunpack.c.l.b16 %v2224
    %v2357 = vunpack.c.l.b16 %v2225
    %v2358 = vunpack.c.l.b16 %v2226
    %v2359 = vunpack.c.l.b16 %v2227
    %v2360 = vunpack.c.l.b16 %v2228
    %v2361 = vunpack.c.l.b16 %v2229
    %v2362 = vunpack.c.l.b16 %v2230
    %v2363 = vunpack.c.l.b16 %v2231
    %v2364 = vunpack.c.l.b16 %v2232
    %v2365 = vunpack.c.l.b16 %v2233
    %v2366 = vunpack.c.l.b16 %v2234
    %v2367 = vunpack.c.l.b16 %v2235
    %v2368 = vunpack.c.l.b16 %v2236
    %v2369 = vunpack.c.l.b16 %v2237
    %v2370 = vunpack.c.l.b16 %v2238
    %v2371 = vunpack.c.l.b16 %v2239
    %v2372 = vunpack.c.l.b16 %v2240
    %v2373 = vunpack.c.l.b16 %v2241
    %v2374 = vunpack.c.l.b16 %v2242
    %v2375 = vunpack.c.l.b16 %v2243
    %v2376 = vunpack.c.l.b16 %v2244
    %v2377 = vunpack.c.l.b16 %v2245
    %v2378 = vunpack.c.l.b16 %v2246
    %v2379 = vunpack.c.l.b16 %v2247
    %v2380 = vunpack.c.l.b16 %v2248
    %v2381 = vunpack.c.l.b16 %v2249
    %v2382 = vunpack.c.l.b16 %v2250
    %v2383 = vunpack.c.l.b16 %v2251
    %v2384 = vunpack.c.l.b16 %v2252
    %v2385 = vunpack.c.l.b16 %v2253
    %v2386 = vunpack.c.l.b16 %v2254
    %v2387 = vunpack.c.l.b16 %v2255
    %v2388 = vunpack.c.l.b16 %v2256
    %v2389 = vunpack.c.l.b16 %v2257
    %v2390 = vunpack.c.l.b16 %v2258
    %v2391 = vunpack.c.l.b16 %v2259
    %v2392 = vunpack.c.l.b16 %v2260
    %v2393 = vunpack.c.l.b16 %v2261
    %v2394 = vunpack.c.l.b16 %v2262
    %v2395 = vunpack.c.l.b16 %v2263
    %v2396 = vunpack.c.l.b16 %v2264
    %v2397 = vunpack.c.l.b16 %v2265
    %v2398 = vunpack.c.l.b16 %v2266
    %v2399 = vunpack.c.l.b16 %v2267
    %v2400 = vpack.c.b16 %v2337, %v2336
    %v2401 = vpack.c.b16 %v2339, %v2338
    %v2402 = vpack.c.b16 %v2341, %v2340
    %v2403 = vpack.c.b16 %v2343, %v2342
    %v2404 = vpack.c.b16 %v2345, %v2344
    %v2405 = vpack.c.b16 %v2347, %v2346
    %v2406 = vpack.c.b16 %v2349, %v2348
    %v2407 = vpack.c.b16 %v2351, %v2350
    %v2408 = vpack.c.b16 %v2353, %v2352
    %v2409 = vpack.c.b16 %v2355, %v2354
    %v2410 = vpack.c.b16 %v2357, %v2356
    %v2411 = vpack.c.b16 %v2359, %v2358
    %v2412 = vpack.c.b16 %v2361, %v2360
    %v2413 = vpack.c.b16 %v2363, %v2362
    %v2414 = vpack.c.b16 %v2365, %v2364
    %v2415 = vpack.c.b16 %v2367, %v2366
    %v2416 = vpack.c.b16 %v2369, %v2368
    %v2417 = vpack.c.b16 %v2371, %v2370
    %v2418 = vpack.c.b16 %v2373, %v2372
    %v2419 = vpack.c.b16 %v2375, %v2374
    %v2420 = vpack.c.b16 %v2377, %v2376
    %v2421 = vpack.c.b16 %v2379, %v2378
    %v2422 = vpack.c.b16 %v2381, %v2380
    %v2423 = vpack.c.b16 %v2383, %v2382
    %v2424 = vpack.c.b16 %v2385, %v2384
    %v2425 = vpack.c.b16 %v2387, %v2386
    %v2426 = vpack.c.b16 %v2389, %v2388
    %v2427 = vpack.c.b16 %v2391, %v2390
    %v2428 = vpack.c.b16 %v2393, %v2392
    %v2429 = vpack.c.b16 %v2395, %v2394
    %v2430 = vpack.c.b16 %v2397, %v2396
    %v2431 = vpack.c.b16 %v2399, %v2398
    %2464 = vmatpush.bf16.msra.mxu0 %v2407
    %2465 = vmatpush.bf16.msra.mxu0 %v2406
    %2466 = vmatpush.bf16.msra.mxu0 %v2405
    %2467 = vmatpush.bf16.msra.mxu0 %v2404
    %2468 = vmatpush.bf16.msra.mxu0 %v2403
    %2469 = vmatpush.bf16.msra.mxu0 %v2402
    %2470 = vmatpush.bf16.msra.mxu0 %v2401
    %2471 = vmatpush.bf16.msra.mxu0 %v2400
    %2472 = vmatmul.bf16.gmra.mxu0 %v2200
    %v2473 = vpop.f32.mrf.mxu0
    %v2474 = vadd.f32 %v2270, %v2473
    %v2475 = vpop.f32.mrf.mxu0
    %2476 = vdwg.mxu0
    %2477 = vmatpush.bf16.msra.mxu0 %v2415
    %2478 = vmatpush.bf16.msra.mxu0 %v2414
    %2479 = vmatpush.bf16.msra.mxu0 %v2413
    %2480 = vmatpush.bf16.msra.mxu0 %v2412
    %2481 = vmatpush.bf16.msra.mxu0 %v2411
    %2482 = vmatpush.bf16.msra.mxu0 %v2410
    %2483 = vmatpush.bf16.msra.mxu0 %v2409
    %2484 = vmatpush.bf16.msra.mxu0 %v2408
    %2485 = vmatmul.bf16.gmra.mxu0 %v2201
    %v2486 = vpop.f32.mrf.mxu0
    %v2487 = vadd.f32 %v2474, %v2486
    %v2488 = vpop.f32.mrf.mxu0
    %2489 = vdwg.mxu0
    %2490 = vmatpush.bf16.msra.mxu0 %v2423
    %2491 = vmatpush.bf16.msra.mxu0 %v2422
    %2492 = vmatpush.bf16.msra.mxu0 %v2421
    %2493 = vmatpush.bf16.msra.mxu0 %v2420
    %2494 = vmatpush.bf16.msra.mxu0 %v2419
    %2495 = vmatpush.bf16.msra.mxu0 %v2418
    %2496 = vmatpush.bf16.msra.mxu0 %v2417
    %2497 = vmatpush.bf16.msra.mxu0 %v2416
    %2498 = vmatmul.bf16.gmra.mxu0 %v2202
    %v2499 = vpop.f32.mrf.mxu0
    %v2500 = vadd.f32 %v2487, %v2499
    %v2501 = vpop.f32.mrf.mxu0
    %2502 = vdwg.mxu0
    %2503 = vmatpush.bf16.msra.mxu0 %v2431
    %2504 = vmatpush.bf16.msra.mxu0 %v2430
    %2505 = vmatpush.bf16.msra.mxu0 %v2429
    %2506 = vmatpush.bf16.msra.mxu0 %v2428
    %2507 = vmatpush.bf16.msra.mxu0 %v2427
    %2508 = vmatpush.bf16.msra.mxu0 %v2426
    %2509 = vmatpush.bf16.msra.mxu0 %v2425
    %2510 = vmatpush.bf16.msra.mxu0 %v2424
    %2511 = vmatmul.bf16.gmra.mxu0 %v2203
    %v2512 = vpop.f32.mrf.mxu0
    %v2513 = vadd.f32 %v2500, %v2512
    %v2514 = vpop.f32.mrf.mxu0
    %2515 = vdwg.mxu0
    %2516 = vst.msk [vmem:[%s21] sm:$0x3] %vm1474, %v2513
    // Predicated region
    $region122: #{generator3d_forward.1} parent=1 // pred_check
      _
    $region123: #{generator3d_forward.1} parent=1 // pred_check_branch
      %2518 = sbr.rel (0) target = $region125
    $region124: #{generator3d_forward.1} parent=1 // pred_region
      _
    $region125: #{generator3d_forward.1} parent=1 // pred_fallthru
      _
    // Predicated region
    $region126: #{generator3d_forward.1} parent=1 // pred_check
      _
    $region127: #{generator3d_forward.1} parent=1 // pred_check_branch
      %2520 = sbr.rel (0) target = $region129
    $region128: #{generator3d_forward.1} parent=1 // pred_region
      _
    $region129: #{generator3d_forward.1} parent=1 // pred_fallthru
      _
    // Predicated region
    $region130: #{generator3d_forward.1} parent=1 // pred_check
      _
    $region131: #{generator3d_forward.1} parent=1 // pred_check_branch
      %2522 = sbr.rel (0) target = $region133
    $region132: #{generator3d_forward.1} parent=1 // pred_region
      _
    $region133: #{generator3d_forward.1} parent=1 // pred_fallthru
      _
    // Predicated region
    $region134: #{generator3d_forward.1} parent=1 // pred_check
      _
    $region135: #{generator3d_forward.1} parent=1 // pred_check_branch
      %2524 = sbr.rel (0) target = $region137
    $region136: #{generator3d_forward.1} parent=1 // pred_region
      _
    $region137: #{generator3d_forward.1} parent=1 // pred_fallthru
      _
    // Predicated region
    $region138: #{generator3d_forward.1} parent=1 // pred_check
      _
    $region139: #{generator3d_forward.1} parent=1 // pred_check_branch
      %2526 = sbr.rel (0) target = $region141
    $region140: #{generator3d_forward.1} parent=1 // pred_region
      _
    $region141: #{generator3d_forward.1} parent=1 // pred_fallthru
      _
    // Predicated region
    $region142: #{generator3d_forward.1} parent=1 // pred_check
      _
    $region143: #{generator3d_forward.1} parent=1 // pred_check_branch
      %2528 = sbr.rel (0) target = $region145
    $region144: #{generator3d_forward.1} parent=1 // pred_region
      _
    $region145: #{generator3d_forward.1} parent=1 // pred_fallthru
      _
    // Predicated region
    $region146: #{generator3d_forward.1} parent=1 // pred_check
      _
    $region147: #{generator3d_forward.1} parent=1 // pred_check_branch
      %2530 = sbr.rel (0) target = $region149
    $region148: #{generator3d_forward.1} parent=1 // pred_region
      _
    $region149: #{generator3d_forward.1} parent=1 // pred_fallthru
      _
    // Predicated region
    $region150: #{generator3d_forward.1} parent=1 // pred_check
      _
    $region151: #{generator3d_forward.1} parent=1 // pred_check_branch
      %2532 = sbr.rel (0) target = $region153
    $region152: #{generator3d_forward.1} parent=1 // pred_region
      _
    $region153: #{generator3d_forward.1} parent=1 // pred_fallthru
      _
    %2533 = vsyncpa [#allocation3], 1
    %2534 = vsyncpa [#allocation5], 1
    %2535 = vsyncpa [#allocation8], 1
    %2536 = vsyncpa [#allocation11], 1
    %2537 = vsyncpa [#allocation14], 1
    %2538 = vsyncpa [#allocation17], 1
    %2539 = vsyncpa [#allocation20], 1

</llo_original>
